<compile_context>
chip_gen: v7x
topology: tpu7x:2x2x1
jax: 0.10.0
libtpu: 0.0.40
codegen_flags: <defaults>
</compile_context>

<pallas_src>
import jax
import jax.numpy as jnp
from jax import lax
from jax.experimental import pallas as pl
from jax.experimental.pallas import tpu as pltpu  # noqa: F401  (kept for TPU-specific tuning hooks)

EPS = 1e-5  # torch.nn.LayerNorm default eps


def _layernorm(v, gamma, beta):
    mu = jnp.mean(v, axis=-1, keepdims=True)
    var = jnp.mean((v - mu) ** 2, axis=-1, keepdims=True)  # biased, like torch LayerNorm
    return (v - mu) * lax.rsqrt(var + EPS) * gamma + beta


def _gelu(v):
    # exact (erf-based) GELU, matching torch.nn.GELU() default
    return 0.5 * v * (1.0 + lax.erf(v * 0.7071067811865476))


def mixer_block_kernel(x_ref, adj_ref, lnv_ref, tokw1_ref, tokw2_ref,
                       chw1_ref, chw2_ref, o_ref):
    B, N, D = x_ref.shape
    T = tokw1_ref.shape[0]          # token_dim
    C = chw1_ref.shape[1]           # channel_dim

    x = x_ref[...]                  # (B, N, D)
    adj = adj_ref[...]              # (B, N, N)

    # Unpack the consolidated parameter tensors (static slices, zero-cost views).
    lnv = lnv_ref[...]                                   # (4, D)
    ln1_g, ln1_b = lnv[0:1, :], lnv[1:2, :]
    ln2_g, ln2_b = lnv[2:3, :], lnv[3:4, :]

    tokw1 = tokw1_ref[...]                               # (T, N+1) = [W1ᵀ | b1ᵀ]
    tw1, tb1 = tokw1[:, :N], tokw1[:, N:N + 1]           # (T, N), (T, 1)
    tokw2 = tokw2_ref[...]                               # (N, T+1) = [W2ᵀ | b2ᵀ]
    tw2, tb2 = tokw2[:, :T], tokw2[:, T:T + 1]           # (N, T), (N, 1)

    chw1 = chw1_ref[...]                                 # (D+1, C) = [W1 ; b1]
    cw1, cb1 = chw1[:D, :], chw1[D:D + 1, :]             # (D, C), (1, C)
    chw2 = chw2_ref[...]                                 # (C+1, D) = [W2 ; b2]
    cw2, cb2 = chw2[:C, :], chw2[C:C + 1, :]             # (C, D), (1, D)

    # ---- a_x = coarsen_adj @ x (batched over B, single MXU pass per batch) ----
    a_x = jnp.einsum("bij,bjd->bid", adj, x, preferred_element_type=jnp.float32)

    # ---- token mix: LN over channels, FF over the token axis, no activation transposes ----
    y = _layernorm(a_x, ln1_g, ln1_b)                    # (B, N, D)
    tw1_b = jnp.broadcast_to(tw1, (B, T, N))             # tiny, hoisted once
    h = _gelu(jnp.einsum("btn,bnd->btd", tw1_b, y,
                         preferred_element_type=jnp.float32) + tb1)   # (B, T, D)
    tw2_b = jnp.broadcast_to(tw2, (B, N, T))
    t = jnp.einsum("bnt,btd->bnd", tw2_b, h,
                   preferred_element_type=jnp.float32) + tb2          # (B, N, D)
    x1 = x + t                                                        # (B, N, D)

    # ---- channel mix (shared weights) on the flattened (B*N, D) slab ----
    # Equivalent to the chunk(32, 1) per-token loop in the PyTorch forward.
    x1f = x1.reshape(B * N, D)
    z = _layernorm(x1f, ln2_g, ln2_b)
    h2 = _gelu(jnp.dot(z, cw1, preferred_element_type=jnp.float32) + cb1)   # (B*N, C)
    c = jnp.dot(h2, cw2, preferred_element_type=jnp.float32) + cb2          # (B*N, D)

    o_ref[...] = (x1f + c).reshape(B, N, D).astype(o_ref.dtype)


def mixer_block(x, coarsen_adj, params):
    B, N, D = x.shape
    T = params["tok_w1"].shape[1]
    C = params["ch_w1"].shape[1]

    # --- consolidate the 12 tiny parameter tensors into 5 arrays (fewer DMAs) ---
    ln_vecs = jnp.concatenate(
        [params["ln1_g"], params["ln1_b"], params["ln2_g"], params["ln2_b"]], axis=0)   # (4, D)
    # Token-mix weights pre-transposed; column-vector biases appended as the last column.
    tok_w1t = jnp.concatenate([params["tok_w1"].T, params["tok_b1"].T], axis=1)         # (T, N+1)
    tok_w2t = jnp.concatenate([params["tok_w2"].T, params["tok_b2"].T], axis=1)         # (N, T+1)
    # Channel-mix weights with their row-vector biases appended as the last row.
    ch_w1b = jnp.concatenate([params["ch_w1"], params["ch_b1"]], axis=0)                 # (D+1, C)
    ch_w2b = jnp.concatenate([params["ch_w2"], params["ch_b2"]], axis=0)                 # (C+1, D)

    flops = (2 * B * N * N * D            # adj @ x
             + 2 * (2 * B * N * T * D)    # token-mix FF
             + 2 * (2 * B * N * D * C))   # channel-mix FF
    transcendentals = B * T * D + B * N * C
    bytes_accessed = 4 * (2 * x.size + coarsen_adj.size + ln_vecs.size
                          + tok_w1t.size + tok_w2t.size + ch_w1b.size + ch_w2b.size)

    # No grid: the whole problem (~hundreds of KB) fits trivially in VMEM on every
    # TPU generation, so a single invocation avoids per-grid-step overhead entirely.
    return pl.pallas_call(
        mixer_block_kernel,
        out_shape=jax.ShapeDtypeStruct((B, N, D), x.dtype),
        cost_estimate=pl.CostEstimate(flops=flops,
                                      transcendentals=transcendentals,
                                      bytes_accessed=bytes_accessed),
    )(x, coarsen_adj, ln_vecs, tok_w1t, tok_w2t, ch_w1b, ch_w2b)


def mixer_block_ref(x, adj, p):
    """Pure-JAX reference mirroring the PyTorch forward (full-precision matmuls)."""
    def ln(v, g, b):
        mu = jnp.mean(v, axis=-1, keepdims=True)
        var = jnp.mean((v - mu) ** 2, axis=-1, keepdims=True)
        return (v - mu) / jnp.sqrt(var + EPS) * g + b

    with jax.default_matmul_precision("highest"):
        a_x = jnp.einsum("bij,bjd->bid", adj, x)
        y = ln(a_x, p["ln1_g"], p["ln1_b"])
        y_t = jnp.swapaxes(y, 1, 2)
        h = _gelu(y_t @ p["tok_w1"] + p["tok_b1"])
        t = h @ p["tok_w2"] + p["tok_b2"]
        x1 = x + jnp.swapaxes(t, 1, 2)
        z = ln(x1, p["ln2_g"], p["ln2_b"])
        h2 = _gelu(z @ p["ch_w1"] + p["ch_b1"])
        return x1 + h2 @ p["ch_w2"] + p["ch_b2"]


def init_params(key, dim, num_patch, token_dim, channel_dim):
    ks = jax.random.split(key, 12)
    f32 = jnp.float32
    return {
        # LayerNorm(dim) params (near torch defaults, with small deterministic noise)
        "ln1_g": 1.0 + 0.05 * jax.random.normal(ks[0], (1, dim), f32),
        "ln1_b": 0.05 * jax.random.normal(ks[1], (1, dim), f32),
        # token_mix FeedForward(num_patch, token_dim)
        "tok_w1": 0.1 * jax.random.normal(ks[2], (num_patch, token_dim), f32),
        "tok_b1": 0.1 * jax.random.normal(ks[3], (1, token_dim), f32),
        "tok_w2": 0.1 * jax.random.normal(ks[4], (token_dim, num_patch), f32),
        "tok_b2": 0.1 * jax.random.normal(ks[5], (1, num_patch), f32),
        # channel_mix_share: LayerNorm(dim) + FeedForward(dim, channel_dim)
        "ln2_g": 1.0 + 0.05 * jax.random.normal(ks[6], (1, dim), f32),
        "ln2_b": 0.05 * jax.random.normal(ks[7], (1, dim), f32),
        "ch_w1": 0.1 * jax.random.normal(ks[8], (dim, channel_dim), f32),
        "ch_b1": 0.1 * jax.random.normal(ks[9], (1, channel_dim), f32),
        "ch_w2": 0.1 * jax.random.normal(ks[10], (channel_dim, dim), f32),
        "ch_b2": 0.1 * jax.random.normal(ks[11], (1, dim), f32),
    }


if __name__ == "__main__":
    # num_patch must be 32 (x.chunk(32, 1) + squeeze); dim = 128 keeps the lane axis
    # dense (unmasked stores) while staying small; batch > 1 so squeeze() only drops
    # the chunked axis.
    B, N, D = 2, 32, 128          # batch, num_patch, dim
    TOKEN_DIM, CHANNEL_DIM = 64, 128

    key = jax.random.PRNGKey(0)
    kx, ka, kp = jax.random.split(key, 3)

    x = jax.random.normal(kx, (B, N, D), jnp.float32)
    # a row-stochastic coarsening adjacency (any (B, N, N) matrix works)
    coarsen_adj = jax.nn.softmax(jax.random.normal(ka, (B, N, N), jnp.float32), axis=-1)
    params = init_params(kp, D, N, TOKEN_DIM, CHANNEL_DIM)

    out = mixer_block(x, coarsen_adj, params)
    out = jax.block_until_ready(out)

    ref = mixer_block_ref(x, coarsen_adj, params)
    assert out.shape == (B, N, D), out.shape
    # f32 everywhere -> tight tolerance (small slack for MXU accumulation order / erf poly).
    assert jnp.allclose(out, ref, atol=1e-4, rtol=1e-4), float(jnp.max(jnp.abs(out - ref)))

    print("KERNEL_OK")
</pallas_src>

<mosaic_0001>
module attributes {stable_mosaic.version = 11 : i64} {
  func.func @mixer_block_kernel(%arg0: memref<2x32x128xf32, #tpu.memory_space<vmem>>, %arg1: memref<2x32x32xf32, #tpu.memory_space<vmem>>, %arg2: memref<4x128xf32, #tpu.memory_space<vmem>>, %arg3: memref<64x33xf32, #tpu.memory_space<vmem>>, %arg4: memref<32x65xf32, #tpu.memory_space<vmem>>, %arg5: memref<129x128xf32, #tpu.memory_space<vmem>>, %arg6: memref<129x128xf32, #tpu.memory_space<vmem>>, %arg7: memref<2x32x128xf32, #tpu.memory_space<vmem>>) attributes {dimension_semantics = [], scalar_prefetch = 0 : i64, scratch_operands = 0 : i64, tpu.core_type = #tpu.core_type<tc>} {
    %c0 = arith.constant 0 : index
    %c0_0 = arith.constant 0 : index
    %c0_1 = arith.constant 0 : index
    %0 = vector.load %arg0[%c0, %c0_0, %c0_1] : memref<2x32x128xf32, #tpu.memory_space<vmem>>, vector<2x32x128xf32>
    %c0_2 = arith.constant 0 : index
    %c0_3 = arith.constant 0 : index
    %c0_4 = arith.constant 0 : index
    %1 = vector.load %arg1[%c0_2, %c0_3, %c0_4] : memref<2x32x32xf32, #tpu.memory_space<vmem>>, vector<2x32x32xf32>
    %c0_5 = arith.constant 0 : index
    %c0_6 = arith.constant 0 : index
    %2 = vector.load %arg2[%c0_5, %c0_6] : memref<4x128xf32, #tpu.memory_space<vmem>>, vector<4x128xf32>
    %3 = vector.extract_strided_slice %2 {offsets = [0, 0], sizes = [1, 128], strides = [1, 1]} : vector<4x128xf32> to vector<1x128xf32>
    %4 = vector.extract_strided_slice %2 {offsets = [1, 0], sizes = [1, 128], strides = [1, 1]} : vector<4x128xf32> to vector<1x128xf32>
    %5 = vector.extract_strided_slice %2 {offsets = [2, 0], sizes = [1, 128], strides = [1, 1]} : vector<4x128xf32> to vector<1x128xf32>
    %6 = vector.extract_strided_slice %2 {offsets = [3, 0], sizes = [1, 128], strides = [1, 1]} : vector<4x128xf32> to vector<1x128xf32>
    %c0_7 = arith.constant 0 : index
    %c0_8 = arith.constant 0 : index
    %7 = vector.load %arg3[%c0_7, %c0_8] : memref<64x33xf32, #tpu.memory_space<vmem>>, vector<64x33xf32>
    %8 = vector.extract_strided_slice %7 {offsets = [0, 0], sizes = [64, 32], strides = [1, 1]} : vector<64x33xf32> to vector<64x32xf32>
    %9 = vector.extract_strided_slice %7 {offsets = [0, 32], sizes = [64, 1], strides = [1, 1]} : vector<64x33xf32> to vector<64x1xf32>
    %c0_9 = arith.constant 0 : index
    %c0_10 = arith.constant 0 : index
    %10 = vector.load %arg4[%c0_9, %c0_10] : memref<32x65xf32, #tpu.memory_space<vmem>>, vector<32x65xf32>
    %11 = vector.extract_strided_slice %10 {offsets = [0, 0], sizes = [32, 64], strides = [1, 1]} : vector<32x65xf32> to vector<32x64xf32>
    %12 = vector.extract_strided_slice %10 {offsets = [0, 64], sizes = [32, 1], strides = [1, 1]} : vector<32x65xf32> to vector<32x1xf32>
    %c0_11 = arith.constant 0 : index
    %c0_12 = arith.constant 0 : index
    %13 = vector.load %arg5[%c0_11, %c0_12] : memref<129x128xf32, #tpu.memory_space<vmem>>, vector<129x128xf32>
    %14 = vector.extract_strided_slice %13 {offsets = [0, 0], sizes = [128, 128], strides = [1, 1]} : vector<129x128xf32> to vector<128x128xf32>
    %15 = vector.extract_strided_slice %13 {offsets = [128, 0], sizes = [1, 128], strides = [1, 1]} : vector<129x128xf32> to vector<1x128xf32>
    %c0_13 = arith.constant 0 : index
    %c0_14 = arith.constant 0 : index
    %16 = vector.load %arg6[%c0_13, %c0_14] : memref<129x128xf32, #tpu.memory_space<vmem>>, vector<129x128xf32>
    %17 = vector.extract_strided_slice %16 {offsets = [0, 0], sizes = [128, 128], strides = [1, 1]} : vector<129x128xf32> to vector<128x128xf32>
    %18 = vector.extract_strided_slice %16 {offsets = [128, 0], sizes = [1, 128], strides = [1, 1]} : vector<129x128xf32> to vector<1x128xf32>
    "tpu.trace_start"() <{level = 10 : i32, message = "bij,bjd->bid"}> : () -> ()
    %cst = arith.constant dense<0.000000e+00> : vector<2x32x128xf32>
    %19 = tpu.matmul %1, %0, %cst {dimension_numbers = #tpu.dot_dimension_numbers<[2], [1], [1], [2], [0, 0, 0, 1, 1, 2], [0], [0]>} : vector<2x32x32xf32>, vector<2x32x128xf32>, vector<2x32x128xf32> -> vector<2x32x128xf32>
    "tpu.trace_stop"() : () -> ()
    %cst_15 = arith.constant dense<0.000000e+00> : vector<2x32xf32>
    %20 = vector.multi_reduction <add>, %19, %cst_15 [2] : vector<2x32x128xf32> to vector<2x32xf32>
    %21 = vector.shape_cast %20 : vector<2x32xf32> to vector<2x32x1xf32>
    %cst_16 = arith.constant 1.280000e+02 : f32
    %22 = vector.broadcast %cst_16 : f32 to vector<2x32x1xf32>
    %23 = arith.divf %21, %22 : vector<2x32x1xf32>
    %24 = vector.broadcast %23 : vector<2x32x1xf32> to vector<2x32x128xf32>
    %25 = arith.subf %19, %24 : vector<2x32x128xf32>
    %26 = arith.mulf %25, %25 : vector<2x32x128xf32>
    %cst_17 = arith.constant dense<0.000000e+00> : vector<2x32xf32>
    %27 = vector.multi_reduction <add>, %26, %cst_17 [2] : vector<2x32x128xf32> to vector<2x32xf32>
    %28 = vector.shape_cast %27 : vector<2x32xf32> to vector<2x32x1xf32>
    %cst_18 = arith.constant 1.280000e+02 : f32
    %29 = vector.broadcast %cst_18 : f32 to vector<2x32x1xf32>
    %30 = arith.divf %28, %29 : vector<2x32x1xf32>
    %31 = vector.broadcast %23 : vector<2x32x1xf32> to vector<2x32x128xf32>
    %32 = arith.subf %19, %31 : vector<2x32x128xf32>
    %cst_19 = arith.constant 9.99999974E-6 : f32
    %33 = vector.broadcast %cst_19 : f32 to vector<2x32x1xf32>
    %34 = arith.addf %30, %33 : vector<2x32x1xf32>
    %35 = math.rsqrt %34 : vector<2x32x1xf32>
    %36 = vector.broadcast %35 : vector<2x32x1xf32> to vector<2x32x128xf32>
    %37 = arith.mulf %32, %36 : vector<2x32x128xf32>
    %38 = vector.shape_cast %3 : vector<1x128xf32> to vector<1x1x128xf32>
    %39 = vector.broadcast %38 : vector<1x1x128xf32> to vector<2x32x128xf32>
    %40 = arith.mulf %37, %39 : vector<2x32x128xf32>
    %41 = vector.shape_cast %4 : vector<1x128xf32> to vector<1x1x128xf32>
    %42 = vector.broadcast %41 : vector<1x1x128xf32> to vector<2x32x128xf32>
    %43 = arith.addf %40, %42 : vector<2x32x128xf32>
    %44 = vector.shape_cast %8 : vector<64x32xf32> to vector<1x64x32xf32>
    %45 = vector.broadcast %44 : vector<1x64x32xf32> to vector<2x64x32xf32>
    "tpu.trace_start"() <{level = 10 : i32, message = "btn,bnd->btd"}> : () -> ()
    %cst_20 = arith.constant dense<0.000000e+00> : vector<2x64x128xf32>
    %46 = tpu.matmul %45, %43, %cst_20 {dimension_numbers = #tpu.dot_dimension_numbers<[2], [1], [1], [2], [0, 0, 0, 1, 1, 2], [0], [0]>} : vector<2x64x32xf32>, vector<2x32x128xf32>, vector<2x64x128xf32> -> vector<2x64x128xf32>
    "tpu.trace_stop"() : () -> ()
    %47 = vector.shape_cast %9 : vector<64x1xf32> to vector<1x64x1xf32>
    %48 = vector.broadcast %47 : vector<1x64x1xf32> to vector<2x64x128xf32>
    %49 = arith.addf %46, %48 : vector<2x64x128xf32>
    %cst_21 = arith.constant 5.000000e-01 : f32
    %50 = vector.broadcast %cst_21 : f32 to vector<2x64x128xf32>
    %51 = arith.mulf %50, %49 : vector<2x64x128xf32>
    %cst_22 = arith.constant 0.707106769 : f32
    %52 = vector.broadcast %cst_22 : f32 to vector<2x64x128xf32>
    %53 = arith.mulf %49, %52 : vector<2x64x128xf32>
    %54 = math.erf %53 : vector<2x64x128xf32>
    %cst_23 = arith.constant 1.000000e+00 : f32
    %55 = vector.broadcast %cst_23 : f32 to vector<2x64x128xf32>
    %56 = arith.addf %55, %54 : vector<2x64x128xf32>
    %57 = arith.mulf %51, %56 : vector<2x64x128xf32>
    %58 = vector.shape_cast %11 : vector<32x64xf32> to vector<1x32x64xf32>
    %59 = vector.broadcast %58 : vector<1x32x64xf32> to vector<2x32x64xf32>
    "tpu.trace_start"() <{level = 10 : i32, message = "bnt,btd->bnd"}> : () -> ()
    %cst_24 = arith.constant dense<0.000000e+00> : vector<2x32x128xf32>
    %60 = tpu.matmul %59, %57, %cst_24 {dimension_numbers = #tpu.dot_dimension_numbers<[2], [1], [1], [2], [0, 0, 0, 1, 1, 2], [0], [0]>} : vector<2x32x64xf32>, vector<2x64x128xf32>, vector<2x32x128xf32> -> vector<2x32x128xf32>
    "tpu.trace_stop"() : () -> ()
    %61 = vector.shape_cast %12 : vector<32x1xf32> to vector<1x32x1xf32>
    %62 = vector.broadcast %61 : vector<1x32x1xf32> to vector<2x32x128xf32>
    %63 = arith.addf %60, %62 : vector<2x32x128xf32>
    %64 = arith.addf %0, %63 : vector<2x32x128xf32>
    %65 = vector.shape_cast %64 : vector<2x32x128xf32> to vector<64x128xf32>
    %cst_25 = arith.constant dense<0.000000e+00> : vector<64xf32>
    %66 = vector.multi_reduction <add>, %65, %cst_25 [1] : vector<64x128xf32> to vector<64xf32>
    %67 = vector.shape_cast %66 : vector<64xf32> to vector<64x1xf32>
    %cst_26 = arith.constant 1.280000e+02 : f32
    %68 = vector.broadcast %cst_26 : f32 to vector<64x1xf32>
    %69 = arith.divf %67, %68 : vector<64x1xf32>
    %70 = vector.broadcast %69 : vector<64x1xf32> to vector<64x128xf32>
    %71 = arith.subf %65, %70 : vector<64x128xf32>
    %72 = arith.mulf %71, %71 : vector<64x128xf32>
    %cst_27 = arith.constant dense<0.000000e+00> : vector<64xf32>
    %73 = vector.multi_reduction <add>, %72, %cst_27 [1] : vector<64x128xf32> to vector<64xf32>
    %74 = vector.shape_cast %73 : vector<64xf32> to vector<64x1xf32>
    %cst_28 = arith.constant 1.280000e+02 : f32
    %75 = vector.broadcast %cst_28 : f32 to vector<64x1xf32>
    %76 = arith.divf %74, %75 : vector<64x1xf32>
    %77 = vector.broadcast %69 : vector<64x1xf32> to vector<64x128xf32>
    %78 = arith.subf %65, %77 : vector<64x128xf32>
    %cst_29 = arith.constant 9.99999974E-6 : f32
    %79 = vector.broadcast %cst_29 : f32 to vector<64x1xf32>
    %80 = arith.addf %76, %79 : vector<64x1xf32>
    %81 = math.rsqrt %80 : vector<64x1xf32>
    %82 = vector.broadcast %81 : vector<64x1xf32> to vector<64x128xf32>
    %83 = arith.mulf %78, %82 : vector<64x128xf32>
    %84 = vector.broadcast %5 : vector<1x128xf32> to vector<64x128xf32>
    %85 = arith.mulf %83, %84 : vector<64x128xf32>
    %86 = vector.broadcast %6 : vector<1x128xf32> to vector<64x128xf32>
    %87 = arith.addf %85, %86 : vector<64x128xf32>
    %cst_30 = arith.constant dense<0.000000e+00> : vector<64x128xf32>
    %88 = tpu.matmul %87, %14, %cst_30 {dimension_numbers = #tpu.dot_dimension_numbers<[1], [0], [0], [1], [0, 0, 1, 1], [], []>} : vector<64x128xf32>, vector<128x128xf32>, vector<64x128xf32> -> vector<64x128xf32>
    %89 = vector.broadcast %15 : vector<1x128xf32> to vector<64x128xf32>
    %90 = arith.addf %88, %89 : vector<64x128xf32>
    %cst_31 = arith.constant 5.000000e-01 : f32
    %91 = vector.broadcast %cst_31 : f32 to vector<64x128xf32>
    %92 = arith.mulf %91, %90 : vector<64x128xf32>
    %cst_32 = arith.constant 0.707106769 : f32
    %93 = vector.broadcast %cst_32 : f32 to vector<64x128xf32>
    %94 = arith.mulf %90, %93 : vector<64x128xf32>
    %95 = math.erf %94 : vector<64x128xf32>
    %cst_33 = arith.constant 1.000000e+00 : f32
    %96 = vector.broadcast %cst_33 : f32 to vector<64x128xf32>
    %97 = arith.addf %96, %95 : vector<64x128xf32>
    %98 = arith.mulf %92, %97 : vector<64x128xf32>
    %cst_34 = arith.constant dense<0.000000e+00> : vector<64x128xf32>
    %99 = tpu.matmul %98, %17, %cst_34 {dimension_numbers = #tpu.dot_dimension_numbers<[1], [0], [0], [1], [0, 0, 1, 1], [], []>} : vector<64x128xf32>, vector<128x128xf32>, vector<64x128xf32> -> vector<64x128xf32>
    %100 = vector.broadcast %18 : vector<1x128xf32> to vector<64x128xf32>
    %101 = arith.addf %99, %100 : vector<64x128xf32>
    %102 = arith.addf %65, %101 : vector<64x128xf32>
    %103 = vector.shape_cast %102 : vector<64x128xf32> to vector<2x32x128xf32>
    %c0_35 = arith.constant 0 : index
    %c0_36 = arith.constant 0 : index
    %c0_37 = arith.constant 0 : index
    %104 = vector.load %arg7[%c0_35, %c0_36, %c0_37] : memref<2x32x128xf32, #tpu.memory_space<vmem>>, vector<2x32x128xf32>
    tpu.vector_store %arg7[%c0_35, %c0_36, %c0_37], %103 {strides = array<i32>} : memref<2x32x128xf32, #tpu.memory_space<vmem>>, vector<2x32x128xf32>,
    return
  }
}

</mosaic_0001>

<llo_original>
// kernel: tpu_custom_call.1
$region0: #{tpu_custom_call.1}
  #allocation0 [shape = 'u32[]', space=smem, size = 0x4, offset = 0x4, fixed_abs, tag = 'smem constant byte address 0x4 - core index']
  #allocation1 [shape = 'u32[144,128]{1,0:T(1,128)}', space=vmem, size = 0x12000, scoped, tag = 'internal scratch']
  %s0 = inlined_call_operand.vmem [shape: f32[2,32,128], index: 0, kind: input, shape index: {}]
  %s1 = inlined_call_operand.hbm [shape: f32[2,32,32], index: 1, kind: input, shape index: {}]
  %s2 = inlined_call_operand.vmem [shape: f32[4,128], index: 2, kind: input, shape index: {}]
  %s3 = inlined_call_operand.vmem [shape: f32[64,33], index: 3, kind: input, shape index: {}]
  %s4 = inlined_call_operand.vmem [shape: f32[32,65], index: 4, kind: input, shape index: {}]
  %s5 = inlined_call_operand.hbm [shape: f32[129,128], index: 5, kind: input, shape index: {}]
  %s6 = inlined_call_operand.hbm [shape: f32[129,128], index: 6, kind: input, shape index: {}]
  %s7 = inlined_call_operand.hbm [shape: f32[2,32,128], index: 7, kind: output, shape index: {}]
  %s8 = sld [smem:[#allocation0]]
  $region50: #{tpu_custom_call.1} parent=0
    _
  %s10 = ssub.s32 1, %s8
  %s11 = scalar_select 0, %s10, %s8
  $region1: #{tpu_custom_call.1} parent=0
    #allocation2 [shape = 'u8[32768]{0}', space=vmem, size = 0x8000, scoped, tag = 'input window, operand 1, single buffered']
    #allocation3 [shape = 's32[1]{0}', space=sflag, size = 0x4, scoped, tag = 'scoped memory for tpu_custom_call.1']
    #allocation4 [shape = 's32[1]{0}', space=sflag, size = 0x4, scoped, tag = 'scoped memory for tpu_custom_call.1']
    #allocation5 [shape = 'u8[69632]{0}', space=vmem, size = 0x11000, scoped, tag = 'input window, operand 5, single buffered']
    #allocation6 [shape = 's32[1]{0}', space=sflag, size = 0x4, scoped, tag = 'scoped memory for tpu_custom_call.1']
    #allocation7 [shape = 'u8[69632]{0}', space=vmem, size = 0x11000, scoped, tag = 'input window, operand 6, single buffered']
    #allocation8 [shape = 'u8[32768]{0}', space=vmem, size = 0x8000, scoped, tag = 'output window, operand 0, single buffered']
    %12 = vsyncpa [#allocation3], 0
    %13 = vsyncpa [#allocation6], 0
    %14 = vsyncpa [#allocation4], 0
    // Predicated region
    $region2: #{tpu_custom_call.1} parent=1 // pred_check
      _
    $region3: #{tpu_custom_call.1} parent=1 // pred_check_branch
      %16 = sbr.rel (0) target = $region5
    $region4: #{tpu_custom_call.1} parent=1 // pred_region
      _
    $region5: #{tpu_custom_call.1} parent=1 // pred_fallthru
      _
    // Predicated region
    $region6: #{tpu_custom_call.1} parent=1 // pred_check
      _
    $region7: #{tpu_custom_call.1} parent=1 // pred_check_branch
      %18 = sbr.rel (0) target = $region9
    $region8: #{tpu_custom_call.1} parent=1 // pred_region
      %s20 = ssub.s32 1024, 1024
      %21 = vsyncadd [#allocation3], %s20
      %s22 = sshll.u32 [#allocation2], 4
      %s23 = int_to_ptr.vmem [resolvable:$true] %s22
      %28 = dma.hbm_to_vmem [thread:$0]  %s1, 1024, %s23, [#allocation3], 128, 128, 8
    $region9: #{tpu_custom_call.1} parent=1 // pred_fallthru
      _
    // Predicated region
    $region10: #{tpu_custom_call.1} parent=1 // pred_check
      _
    $region11: #{tpu_custom_call.1} parent=1 // pred_check_branch
      %30 = sbr.rel (0) target = $region13
    $region12: #{tpu_custom_call.1} parent=1 // pred_region
      _
    $region13: #{tpu_custom_call.1} parent=1 // pred_fallthru
      _
    // Predicated region
    $region14: #{tpu_custom_call.1} parent=1 // pred_check
      _
    $region15: #{tpu_custom_call.1} parent=1 // pred_check_branch
      %32 = sbr.rel (0) target = $region17
    $region16: #{tpu_custom_call.1} parent=1 // pred_region
      _
    $region17: #{tpu_custom_call.1} parent=1 // pred_fallthru
      _
    // Predicated region
    $region18: #{tpu_custom_call.1} parent=1 // pred_check
      _
    $region19: #{tpu_custom_call.1} parent=1 // pred_check_branch
      %34 = sbr.rel (0) target = $region21
    $region20: #{tpu_custom_call.1} parent=1 // pred_region
      _
    $region21: #{tpu_custom_call.1} parent=1 // pred_fallthru
      _
    // Predicated region
    $region22: #{tpu_custom_call.1} parent=1 // pred_check
      _
    $region23: #{tpu_custom_call.1} parent=1 // pred_check_branch
      %36 = sbr.rel (0) target = $region25
    $region24: #{tpu_custom_call.1} parent=1 // pred_region
      %s38 = ssub.s32 2176, 2176
      %39 = vsyncadd [#allocation6], %s38
      %s40 = sshll.u32 [#allocation5], 4
      %s41 = int_to_ptr.vmem [resolvable:$true] %s40
      %46 = dma.hbm_to_vmem [thread:$0]  %s5, 2176, %s41, [#allocation6], 128, 128, 8
    $region25: #{tpu_custom_call.1} parent=1 // pred_fallthru
      _
    // Predicated region
    $region26: #{tpu_custom_call.1} parent=1 // pred_check
      _
    $region27: #{tpu_custom_call.1} parent=1 // pred_check_branch
      %48 = sbr.rel (0) target = $region29
    $region28: #{tpu_custom_call.1} parent=1 // pred_region
      %s50 = ssub.s32 2176, 2176
      %51 = vsyncadd [#allocation6], %s50
      %s52 = sshll.u32 [#allocation7], 4
      %s53 = int_to_ptr.vmem [resolvable:$true] %s52
      %58 = dma.hbm_to_vmem [thread:$0]  %s6, 2176, %s53, [#allocation6], 128, 128, 8
    $region29: #{tpu_custom_call.1} parent=1 // pred_fallthru
      _
    // Predicated region
    $region30: #{tpu_custom_call.1} parent=1 // pred_check
      _
    $region31: #{tpu_custom_call.1} parent=1 // pred_check_branch
      %60 = sbr.rel (0) target = $region33
    $region32: #{tpu_custom_call.1} parent=1 // pred_region
      %61 = dma.done [#allocation3], 1024
    $region33: #{tpu_custom_call.1} parent=1 // pred_fallthru
      _
    // Predicated region
    $region34: #{tpu_custom_call.1} parent=1 // pred_check
      _
    $region35: #{tpu_custom_call.1} parent=1 // pred_check_branch
      %63 = sbr.rel (0) target = $region37
    $region36: #{tpu_custom_call.1} parent=1 // pred_region
      %64 = dma.done [#allocation6], 2176
    $region37: #{tpu_custom_call.1} parent=1 // pred_fallthru
      _
    // Predicated region
    $region38: #{tpu_custom_call.1} parent=1 // pred_check
      _
    $region39: #{tpu_custom_call.1} parent=1 // pred_check_branch
      %66 = sbr.rel (0) target = $region41
    $region40: #{tpu_custom_call.1} parent=1 // pred_region
      %67 = dma.done [#allocation6], 2176
    $region41: #{tpu_custom_call.1} parent=1 // pred_fallthru
      _
    %v68 = vld [vmem:[%s0] sm:$0xff]
    %v69 = vld [vmem:[%s0 + $0x8] sm:$0xff]
    %v70 = vld [vmem:[%s0 + $0x10] sm:$0xff]
    %v71 = vld [vmem:[%s0 + $0x18] sm:$0xff]
    %v72 = vld [vmem:[%s0 + $0x20] sm:$0xff]
    %v73 = vld [vmem:[%s0 + $0x28] sm:$0xff]
    %v74 = vld [vmem:[%s0 + $0x30] sm:$0xff]
    %v75 = vld [vmem:[%s0 + $0x38] sm:$0xff]
    %v76 = vld [vmem:[#allocation2] sm:$0xff]
    %v77 = vld [vmem:[#allocation2 + $0x8] sm:$0xff]
    %v78 = vld [vmem:[#allocation2 + $0x10] sm:$0xff]
    %v79 = vld [vmem:[#allocation2 + $0x18] sm:$0xff]
    %v80 = vld [vmem:[#allocation2 + $0x20] sm:$0xff]
    %v81 = vld [vmem:[#allocation2 + $0x28] sm:$0xff]
    %v82 = vld [vmem:[#allocation2 + $0x30] sm:$0xff]
    %v83 = vld [vmem:[#allocation2 + $0x38] sm:$0xff]
    %v84 = vld [vmem:[%s2] sm:$0xf]
    %v85 = vld [vmem:[%s3] sm:$0xff]
    %v86 = vld [vmem:[%s3 + $0x8] sm:$0xff]
    %v87 = vld [vmem:[%s3 + $0x10] sm:$0xff]
    %v88 = vld [vmem:[%s3 + $0x18] sm:$0xff]
    %v89 = vld [vmem:[%s3 + $0x20] sm:$0xff]
    %v90 = vld [vmem:[%s3 + $0x28] sm:$0xff]
    %v91 = vld [vmem:[%s3 + $0x30] sm:$0xff]
    %v92 = vld [vmem:[%s3 + $0x38] sm:$0xff]
    %v93 = vld [vmem:[%s4] sm:$0xff]
    %v94 = vld [vmem:[%s4 + $0x8] sm:$0xff]
    %v95 = vld [vmem:[%s4 + $0x10] sm:$0xff]
    %v96 = vld [vmem:[%s4 + $0x18] sm:$0xff]
    %v97 = vld [vmem:[#allocation5] sm:$0xff]
    %v98 = vld [vmem:[#allocation5 + $0x8] sm:$0xff]
    %v99 = vld [vmem:[#allocation5 + $0x10] sm:$0xff]
    %v100 = vld [vmem:[#allocation5 + $0x18] sm:$0xff]
    %v101 = vld [vmem:[#allocation5 + $0x20] sm:$0xff]
    %v102 = vld [vmem:[#allocation5 + $0x28] sm:$0xff]
    %v103 = vld [vmem:[#allocation5 + $0x30] sm:$0xff]
    %v104 = vld [vmem:[#allocation5 + $0x38] sm:$0xff]
    %v105 = vld [vmem:[#allocation5 + $0x40] sm:$0xff]
    %v106 = vld [vmem:[#allocation5 + $0x48] sm:$0xff]
    %v107 = vld [vmem:[#allocation5 + $0x50] sm:$0xff]
    %v108 = vld [vmem:[#allocation5 + $0x58] sm:$0xff]
    %v109 = vld [vmem:[#allocation5 + $0x60] sm:$0xff]
    %v110 = vld [vmem:[#allocation5 + $0x68] sm:$0xff]
    %v111 = vld [vmem:[#allocation5 + $0x70] sm:$0xff]
    %v112 = vld [vmem:[#allocation5 + $0x78] sm:$0xff]
    %v113 = vld [vmem:[#allocation5 + $0x80] sm:$0x1]
    %v114 = vld [vmem:[#allocation7] sm:$0xff]
    %v115 = vld [vmem:[#allocation7 + $0x8] sm:$0xff]
    %v116 = vld [vmem:[#allocation7 + $0x10] sm:$0xff]
    %v117 = vld [vmem:[#allocation7 + $0x18] sm:$0xff]
    %v118 = vld [vmem:[#allocation7 + $0x20] sm:$0xff]
    %v119 = vld [vmem:[#allocation7 + $0x28] sm:$0xff]
    %v120 = vld [vmem:[#allocation7 + $0x30] sm:$0xff]
    %v121 = vld [vmem:[#allocation7 + $0x38] sm:$0xff]
    %v122 = vld [vmem:[#allocation7 + $0x40] sm:$0xff]
    %v123 = vld [vmem:[#allocation7 + $0x48] sm:$0xff]
    %v124 = vld [vmem:[#allocation7 + $0x50] sm:$0xff]
    %v125 = vld [vmem:[#allocation7 + $0x58] sm:$0xff]
    %v126 = vld [vmem:[#allocation7 + $0x60] sm:$0xff]
    %v127 = vld [vmem:[#allocation7 + $0x68] sm:$0xff]
    %v128 = vld [vmem:[#allocation7 + $0x70] sm:$0xff]
    %v129 = vld [vmem:[#allocation7 + $0x78] sm:$0xff]
    %v130 = vld [vmem:[#allocation7 + $0x80] sm:$0x1]
    %vm131 = vcmask 261120
    %v133 = vsel %vm131, %v76, 0
    %v136 = vsel %vm131, %v77, 0
    %v139 = vsel %vm131, %v78, 0
    %v142 = vsel %vm131, %v79, 0
    %144 = vmatprep.subr.mxu0 0.0
    %145 = vmatpush1.msra.mxu0 %v68
    %146 = vmatprep.subr.mxu0 0.0
    %147 = vmatpush1.msra.mxu0 %v69
    %148 = vmatprep.subr.mxu0 0.0
    %149 = vmatpush1.msra.mxu0 %v70
    %150 = vmatprep.subr.mxu0 0.0
    %151 = vmatpush1.msra.mxu0 %v71
    %152 = vmatprep.subr.mxu0 0.0
    %153 = vmatpush1.msra.mxu0 0.0
    %154 = vmatprep.subr.mxu0 0.0
    %155 = vmatpush1.msra.mxu0 0.0
    %156 = vmatprep.subr.mxu0 0.0
    %157 = vmatpush1.msra.mxu0 0.0
    %158 = vmatprep.subr.mxu0 0.0
    %159 = vmatpush1.msra.mxu0 0.0
    %160 = vmatprep.subr.mxu0 0.0
    %161 = vmatpush1.msra.mxu0 0.0
    %162 = vmatprep.subr.mxu0 0.0
    %163 = vmatpush1.msra.mxu0 0.0
    %164 = vmatprep.subr.mxu0 0.0
    %165 = vmatpush1.msra.mxu0 0.0
    %166 = vmatprep.subr.mxu0 0.0
    %167 = vmatpush1.msra.mxu0 0.0
    %168 = vmatprep.subr.mxu0 0.0
    %169 = vmatpush1.msra.mxu0 0.0
    %170 = vmatprep.subr.mxu0 0.0
    %171 = vmatpush1.msra.mxu0 0.0
    %172 = vmatprep.subr.mxu0 0.0
    %173 = vmatpush1.msra.mxu0 0.0
    %174 = vmatprep.subr.mxu0 0.0
    %175 = vmatpush1.msra.mxu0 0.0
    %176 = vmatprep.subr.mxu0 0.0
    %177 = vmatpush1.msra.mxu0 0.0
    %178 = vmatprep.subr.mxu0 0.0
    %179 = vmatpush1.msra.mxu0 0.0
    %180 = vmatprep.subr.mxu0 0.0
    %181 = vmatpush1.msra.mxu0 0.0
    %182 = vmatprep.subr.mxu0 0.0
    %183 = vmatpush1.msra.mxu0 0.0
    %184 = vmatprep.subr.mxu0 0.0
    %185 = vmatpush1.msra.mxu0 0.0
    %186 = vmatprep.subr.mxu0 0.0
    %187 = vmatpush1.msra.mxu0 0.0
    %188 = vmatprep.subr.mxu0 0.0
    %189 = vmatpush1.msra.mxu0 0.0
    %190 = vmatprep.subr.mxu0 0.0
    %191 = vmatpush1.msra.mxu0 0.0
    %192 = vmatprep.subr.mxu0 0.0
    %193 = vmatpush1.msra.mxu0 0.0
    %194 = vmatprep.subr.mxu0 0.0
    %195 = vmatpush1.msra.mxu0 0.0
    %196 = vmatprep.subr.mxu0 0.0
    %197 = vmatpush1.msra.mxu0 0.0
    %198 = vmatprep.subr.mxu0 0.0
    %199 = vmatpush1.msra.mxu0 0.0
    %200 = vmatprep.subr.mxu0 0.0
    %201 = vmatpush1.msra.mxu0 0.0
    %202 = vmatprep.subr.mxu0 0.0
    %203 = vmatpush1.msra.mxu0 0.0
    %204 = vmatprep.subr.mxu0 0.0
    %205 = vmatpush1.msra.mxu0 0.0
    %206 = vmatprep.subr.mxu0 0.0
    %207 = vmatpush1.msra.mxu0 0.0
    %208 = vmatprep.mubr.f32.mxu0 0.0
    %209 = vmatmul.mubr.f32.gmra.mrb[0].mxu0 %v133
    %v210 = vpop.f32.mrb[0].mxu0
    %v211 = vadd.f32 0.0, %v210
    %v212 = vpop.f32.mrb[0].mxu0
    %213 = vmatprep.mubr.f32.mxu0 0.0
    %214 = vmatmul.mubr.f32.gmra.mrb[0].mxu0 %v136
    %v215 = vpop.f32.mrb[0].mxu0
    %v216 = vadd.f32 0.0, %v215
    %v217 = vpop.f32.mrb[0].mxu0
    %218 = vmatprep.mubr.f32.mxu0 0.0
    %219 = vmatmul.mubr.f32.gmra.mrb[0].mxu0 %v139
    %v220 = vpop.f32.mrb[0].mxu0
    %v221 = vadd.f32 0.0, %v220
    %v222 = vpop.f32.mrb[0].mxu0
    %223 = vmatprep.mubr.f32.mxu0 0.0
    %224 = vmatmul.mubr.f32.gmra.mrb[0].mxu0 %v142
    %v225 = vpop.f32.mrb[0].mxu0
    %v226 = vadd.f32 0.0, %v225
    %v227 = vpop.f32.mrb[0].mxu0
    %228 = vdwg.mxu0
    %v230 = vsel %vm131, %v80, 0
    %v233 = vsel %vm131, %v81, 0
    %v236 = vsel %vm131, %v82, 0
    %v239 = vsel %vm131, %v83, 0
    %241 = vmatprep.subr.mxu0 0.0
    %242 = vmatpush1.msra.mxu0 %v72
    %243 = vmatprep.subr.mxu0 0.0
    %244 = vmatpush1.msra.mxu0 %v73
    %245 = vmatprep.subr.mxu0 0.0
    %246 = vmatpush1.msra.mxu0 %v74
    %247 = vmatprep.subr.mxu0 0.0
    %248 = vmatpush1.msra.mxu0 %v75
    %249 = vmatprep.subr.mxu0 0.0
    %250 = vmatpush1.msra.mxu0 0.0
    %251 = vmatprep.subr.mxu0 0.0
    %252 = vmatpush1.msra.mxu0 0.0
    %253 = vmatprep.subr.mxu0 0.0
    %254 = vmatpush1.msra.mxu0 0.0
    %255 = vmatprep.subr.mxu0 0.0
    %256 = vmatpush1.msra.mxu0 0.0
    %257 = vmatprep.subr.mxu0 0.0
    %258 = vmatpush1.msra.mxu0 0.0
    %259 = vmatprep.subr.mxu0 0.0
    %260 = vmatpush1.msra.mxu0 0.0
    %261 = vmatprep.subr.mxu0 0.0
    %262 = vmatpush1.msra.mxu0 0.0
    %263 = vmatprep.subr.mxu0 0.0
    %264 = vmatpush1.msra.mxu0 0.0
    %265 = vmatprep.subr.mxu0 0.0
    %266 = vmatpush1.msra.mxu0 0.0
    %267 = vmatprep.subr.mxu0 0.0
    %268 = vmatpush1.msra.mxu0 0.0
    %269 = vmatprep.subr.mxu0 0.0
    %270 = vmatpush1.msra.mxu0 0.0
    %271 = vmatprep.subr.mxu0 0.0
    %272 = vmatpush1.msra.mxu0 0.0
    %273 = vmatprep.subr.mxu0 0.0
    %274 = vmatpush1.msra.mxu0 0.0
    %275 = vmatprep.subr.mxu0 0.0
    %276 = vmatpush1.msra.mxu0 0.0
    %277 = vmatprep.subr.mxu0 0.0
    %278 = vmatpush1.msra.mxu0 0.0
    %279 = vmatprep.subr.mxu0 0.0
    %280 = vmatpush1.msra.mxu0 0.0
    %281 = vmatprep.subr.mxu0 0.0
    %282 = vmatpush1.msra.mxu0 0.0
    %283 = vmatprep.subr.mxu0 0.0
    %284 = vmatpush1.msra.mxu0 0.0
    %285 = vmatprep.subr.mxu0 0.0
    %286 = vmatpush1.msra.mxu0 0.0
    %287 = vmatprep.subr.mxu0 0.0
    %288 = vmatpush1.msra.mxu0 0.0
    %289 = vmatprep.subr.mxu0 0.0
    %290 = vmatpush1.msra.mxu0 0.0
    %291 = vmatprep.subr.mxu0 0.0
    %292 = vmatpush1.msra.mxu0 0.0
    %293 = vmatprep.subr.mxu0 0.0
    %294 = vmatpush1.msra.mxu0 0.0
    %295 = vmatprep.subr.mxu0 0.0
    %296 = vmatpush1.msra.mxu0 0.0
    %297 = vmatprep.subr.mxu0 0.0
    %298 = vmatpush1.msra.mxu0 0.0
    %299 = vmatprep.subr.mxu0 0.0
    %300 = vmatpush1.msra.mxu0 0.0
    %301 = vmatprep.subr.mxu0 0.0
    %302 = vmatpush1.msra.mxu0 0.0
    %303 = vmatprep.subr.mxu0 0.0
    %304 = vmatpush1.msra.mxu0 0.0
    %305 = vmatprep.mubr.f32.mxu0 0.0
    %306 = vmatmul.mubr.f32.gmra.mrb[0].mxu0 %v230
    %v307 = vpop.f32.mrb[0].mxu0
    %v308 = vadd.f32 0.0, %v307
    %v309 = vpop.f32.mrb[0].mxu0
    %310 = vmatprep.mubr.f32.mxu0 0.0
    %311 = vmatmul.mubr.f32.gmra.mrb[0].mxu0 %v233
    %v312 = vpop.f32.mrb[0].mxu0
    %v313 = vadd.f32 0.0, %v312
    %v314 = vpop.f32.mrb[0].mxu0
    %315 = vmatprep.mubr.f32.mxu0 0.0
    %316 = vmatmul.mubr.f32.gmra.mrb[0].mxu0 %v236
    %v317 = vpop.f32.mrb[0].mxu0
    %v318 = vadd.f32 0.0, %v317
    %v319 = vpop.f32.mrb[0].mxu0
    %320 = vmatprep.mubr.f32.mxu0 0.0
    %321 = vmatmul.mubr.f32.gmra.mrb[0].mxu0 %v239
    %v322 = vpop.f32.mrb[0].mxu0
    %v323 = vadd.f32 0.0, %v322
    %v324 = vpop.f32.mrb[0].mxu0
    %325 = vdwg.mxu0
    %326 = vadd.xlane.f32.xlu0 %v211
    %v327 = vpop.xlane.xlu0 %326
    %328 = vadd.xlane.f32.xlu0 %v216
    %v329 = vpop.xlane.xlu0 %328
    %330 = vadd.xlane.f32.xlu0 %v221
    %v331 = vpop.xlane.xlu0 %330
    %332 = vadd.xlane.f32.xlu0 %v226
    %v333 = vpop.xlane.xlu0 %332
    %334 = vadd.xlane.f32.xlu0 %v308
    %v335 = vpop.xlane.xlu0 %334
    %336 = vadd.xlane.f32.xlu0 %v313
    %v337 = vpop.xlane.xlu0 %336
    %338 = vadd.xlane.f32.xlu0 %v318
    %v339 = vpop.xlane.xlu0 %338
    %340 = vadd.xlane.f32.xlu0 %v323
    %v341 = vpop.xlane.xlu0 %340
    %v342 = vrcp.pop 128.0
    %v343 = vmul.f32 %v327, %v342
    %v344 = vmul.f32 %v329, %v342
    %v345 = vmul.f32 %v331, %v342
    %v346 = vmul.f32 %v333, %v342
    %v347 = vmul.f32 %v335, %v342
    %v348 = vmul.f32 %v337, %v342
    %v349 = vmul.f32 %v339, %v342
    %v350 = vmul.f32 %v341, %v342
    %v351 = vsub.f32 %v211, %v343
    %v352 = vsub.f32 %v216, %v344
    %v353 = vsub.f32 %v221, %v345
    %v354 = vsub.f32 %v226, %v346
    %v355 = vsub.f32 %v308, %v347
    %v356 = vsub.f32 %v313, %v348
    %v357 = vsub.f32 %v318, %v349
    %v358 = vsub.f32 %v323, %v350
    %v359 = vmul.f32 %v351, %v351
    %v360 = vmul.f32 %v352, %v352
    %v361 = vmul.f32 %v353, %v353
    %v362 = vmul.f32 %v354, %v354
    %v363 = vmul.f32 %v355, %v355
    %v364 = vmul.f32 %v356, %v356
    %v365 = vmul.f32 %v357, %v357
    %v366 = vmul.f32 %v358, %v358
    %367 = vadd.xlane.f32.xlu0 %v359
    %v368 = vpop.xlane.xlu0 %367
    %369 = vadd.xlane.f32.xlu0 %v360
    %v370 = vpop.xlane.xlu0 %369
    %371 = vadd.xlane.f32.xlu0 %v361
    %v372 = vpop.xlane.xlu0 %371
    %373 = vadd.xlane.f32.xlu0 %v362
    %v374 = vpop.xlane.xlu0 %373
    %375 = vadd.xlane.f32.xlu0 %v363
    %v376 = vpop.xlane.xlu0 %375
    %377 = vadd.xlane.f32.xlu0 %v364
    %v378 = vpop.xlane.xlu0 %377
    %379 = vadd.xlane.f32.xlu0 %v365
    %v380 = vpop.xlane.xlu0 %379
    %381 = vadd.xlane.f32.xlu0 %v366
    %v382 = vpop.xlane.xlu0 %381
    %v383 = vmul.f32 %v368, %v342
    %v384 = vmul.f32 %v370, %v342
    %v385 = vmul.f32 %v372, %v342
    %v386 = vmul.f32 %v374, %v342
    %v387 = vmul.f32 %v376, %v342
    %v388 = vmul.f32 %v378, %v342
    %v389 = vmul.f32 %v380, %v342
    %v390 = vmul.f32 %v382, %v342
    %v391 = vadd.f32 %v383, 1e-05
    %v392 = vadd.f32 %v384, 1e-05
    %v393 = vadd.f32 %v385, 1e-05
    %v394 = vadd.f32 %v386, 1e-05
    %v395 = vadd.f32 %v387, 1e-05
    %v396 = vadd.f32 %v388, 1e-05
    %v397 = vadd.f32 %v389, 1e-05
    %v398 = vadd.f32 %v390, 1e-05
    %v399 = vrsqrt.pop %v391
    %v400 = vrsqrt.pop %v392
    %v401 = vrsqrt.pop %v393
    %v402 = vrsqrt.pop %v394
    %v403 = vrsqrt.pop %v395
    %v404 = vrsqrt.pop %v396
    %v405 = vrsqrt.pop %v397
    %v406 = vrsqrt.pop %v398
    %v407 = vmul.f32 %v351, %v399
    %v408 = vmul.f32 %v352, %v400
    %v409 = vmul.f32 %v353, %v401
    %v410 = vmul.f32 %v354, %v402
    %v411 = vmul.f32 %v355, %v403
    %v412 = vmul.f32 %v356, %v404
    %v413 = vmul.f32 %v357, %v405
    %v414 = vmul.f32 %v358, %v406
    %v415 = vlaneseq
    %v416 = vshrl.u32 %v415, 7
    %v417 = vsub.s32 0, %v416
    %v418 = vrot.slane %v84, %v417
    %v419 = vmul.f32 %v407, %v418
    %v420 = vmul.f32 %v408, %v418
    %v421 = vmul.f32 %v409, %v418
    %v422 = vmul.f32 %v410, %v418
    %v423 = vmul.f32 %v411, %v418
    %v424 = vmul.f32 %v412, %v418
    %v425 = vmul.f32 %v413, %v418
    %v426 = vmul.f32 %v414, %v418
    %v427 = vlaneseq
    %v428 = vshrl.u32 %v427, 7
    %v429 = vsub.s32 1, %v428
    %v430 = vrot.slane %v84, %v429
    %v431 = vadd.f32 %v419, %v430
    %v432 = vadd.f32 %v420, %v430
    %v433 = vadd.f32 %v421, %v430
    %v434 = vadd.f32 %v422, %v430
    %v435 = vadd.f32 %v423, %v430
    %v436 = vadd.f32 %v424, %v430
    %v437 = vadd.f32 %v425, %v430
    %v438 = vadd.f32 %v426, %v430
    %440 = vset.pattern.permute.xlu0 32
    %441 = vperm.xlu0 %440, %v85
    %v442 = vpop.permute.xlu0 %441
    %445 = vset.pattern.permute.xlu0 32
    %446 = vperm.xlu0 %445, %v86
    %v447 = vpop.permute.xlu0 %446
    %450 = vset.pattern.permute.xlu0 32
    %451 = vperm.xlu0 %450, %v87
    %v452 = vpop.permute.xlu0 %451
    %455 = vset.pattern.permute.xlu0 32
    %456 = vperm.xlu0 %455, %v88
    %v457 = vpop.permute.xlu0 %456
    %460 = vset.pattern.permute.xlu0 32
    %461 = vperm.xlu0 %460, %v89
    %v462 = vpop.permute.xlu0 %461
    %465 = vset.pattern.permute.xlu0 32
    %466 = vperm.xlu0 %465, %v90
    %v467 = vpop.permute.xlu0 %466
    %470 = vset.pattern.permute.xlu0 32
    %471 = vperm.xlu0 %470, %v91
    %v472 = vpop.permute.xlu0 %471
    %475 = vset.pattern.permute.xlu0 32
    %476 = vperm.xlu0 %475, %v92
    %v477 = vpop.permute.xlu0 %476
    %v479 = vsel %vm131, %v85, 0
    %v481 = vsel %vm131, %v86, 0
    %v483 = vsel %vm131, %v87, 0
    %v485 = vsel %vm131, %v88, 0
    %v487 = vsel %vm131, %v89, 0
    %v489 = vsel %vm131, %v90, 0
    %v491 = vsel %vm131, %v91, 0
    %v493 = vsel %vm131, %v92, 0
    %495 = vmatprep.subr.mxu0 0.0
    %496 = vmatpush1.msra.mxu0 %v431
    %497 = vmatprep.subr.mxu0 0.0
    %498 = vmatpush1.msra.mxu0 %v432
    %499 = vmatprep.subr.mxu0 0.0
    %500 = vmatpush1.msra.mxu0 %v433
    %501 = vmatprep.subr.mxu0 0.0
    %502 = vmatpush1.msra.mxu0 %v434
    %503 = vmatprep.subr.mxu0 0.0
    %504 = vmatpush1.msra.mxu0 0.0
    %505 = vmatprep.subr.mxu0 0.0
    %506 = vmatpush1.msra.mxu0 0.0
    %507 = vmatprep.subr.mxu0 0.0
    %508 = vmatpush1.msra.mxu0 0.0
    %509 = vmatprep.subr.mxu0 0.0
    %510 = vmatpush1.msra.mxu0 0.0
    %511 = vmatprep.subr.mxu0 0.0
    %512 = vmatpush1.msra.mxu0 0.0
    %513 = vmatprep.subr.mxu0 0.0
    %514 = vmatpush1.msra.mxu0 0.0
    %515 = vmatprep.subr.mxu0 0.0
    %516 = vmatpush1.msra.mxu0 0.0
    %517 = vmatprep.subr.mxu0 0.0
    %518 = vmatpush1.msra.mxu0 0.0
    %519 = vmatprep.subr.mxu0 0.0
    %520 = vmatpush1.msra.mxu0 0.0
    %521 = vmatprep.subr.mxu0 0.0
    %522 = vmatpush1.msra.mxu0 0.0
    %523 = vmatprep.subr.mxu0 0.0
    %524 = vmatpush1.msra.mxu0 0.0
    %525 = vmatprep.subr.mxu0 0.0
    %526 = vmatpush1.msra.mxu0 0.0
    %527 = vmatprep.subr.mxu0 0.0
    %528 = vmatpush1.msra.mxu0 0.0
    %529 = vmatprep.subr.mxu0 0.0
    %530 = vmatpush1.msra.mxu0 0.0
    %531 = vmatprep.subr.mxu0 0.0
    %532 = vmatpush1.msra.mxu0 0.0
    %533 = vmatprep.subr.mxu0 0.0
    %534 = vmatpush1.msra.mxu0 0.0
    %535 = vmatprep.subr.mxu0 0.0
    %536 = vmatpush1.msra.mxu0 0.0
    %537 = vmatprep.subr.mxu0 0.0
    %538 = vmatpush1.msra.mxu0 0.0
    %539 = vmatprep.subr.mxu0 0.0
    %540 = vmatpush1.msra.mxu0 0.0
    %541 = vmatprep.subr.mxu0 0.0
    %542 = vmatpush1.msra.mxu0 0.0
    %543 = vmatprep.subr.mxu0 0.0
    %544 = vmatpush1.msra.mxu0 0.0
    %545 = vmatprep.subr.mxu0 0.0
    %546 = vmatpush1.msra.mxu0 0.0
    %547 = vmatprep.subr.mxu0 0.0
    %548 = vmatpush1.msra.mxu0 0.0
    %549 = vmatprep.subr.mxu0 0.0
    %550 = vmatpush1.msra.mxu0 0.0
    %551 = vmatprep.subr.mxu0 0.0
    %552 = vmatpush1.msra.mxu0 0.0
    %553 = vmatprep.subr.mxu0 0.0
    %554 = vmatpush1.msra.mxu0 0.0
    %555 = vmatprep.subr.mxu0 0.0
    %556 = vmatpush1.msra.mxu0 0.0
    %557 = vmatprep.subr.mxu0 0.0
    %558 = vmatpush1.msra.mxu0 0.0
    %559 = vmatprep.mubr.f32.mxu0 0.0
    %560 = vmatmul.mubr.f32.gmra.mrb[0].mxu0 %v479
    %v561 = vpop.f32.mrb[0].mxu0
    %v562 = vadd.f32 %v442, %v561
    %v563 = vpop.f32.mrb[0].mxu0
    %564 = vmatprep.mubr.f32.mxu0 0.0
    %565 = vmatmul.mubr.f32.gmra.mrb[0].mxu0 %v481
    %v566 = vpop.f32.mrb[0].mxu0
    %v567 = vadd.f32 %v447, %v566
    %v568 = vpop.f32.mrb[0].mxu0
    %569 = vmatprep.mubr.f32.mxu0 0.0
    %570 = vmatmul.mubr.f32.gmra.mrb[0].mxu0 %v483
    %v571 = vpop.f32.mrb[0].mxu0
    %v572 = vadd.f32 %v452, %v571
    %v573 = vpop.f32.mrb[0].mxu0
    %574 = vmatprep.mubr.f32.mxu0 0.0
    %575 = vmatmul.mubr.f32.gmra.mrb[0].mxu0 %v485
    %v576 = vpop.f32.mrb[0].mxu0
    %v577 = vadd.f32 %v457, %v576
    %v578 = vpop.f32.mrb[0].mxu0
    %579 = vmatprep.mubr.f32.mxu0 0.0
    %580 = vmatmul.mubr.f32.gmra.mrb[0].mxu0 %v487
    %v581 = vpop.f32.mrb[0].mxu0
    %v582 = vadd.f32 %v462, %v581
    %v583 = vpop.f32.mrb[0].mxu0
    %584 = vmatprep.mubr.f32.mxu0 0.0
    %585 = vmatmul.mubr.f32.gmra.mrb[0].mxu0 %v489
    %v586 = vpop.f32.mrb[0].mxu0
    %v587 = vadd.f32 %v467, %v586
    %v588 = vpop.f32.mrb[0].mxu0
    %589 = vmatprep.mubr.f32.mxu0 0.0
    %590 = vmatmul.mubr.f32.gmra.mrb[0].mxu0 %v491
    %v591 = vpop.f32.mrb[0].mxu0
    %v592 = vadd.f32 %v472, %v591
    %v593 = vpop.f32.mrb[0].mxu0
    %594 = vmatprep.mubr.f32.mxu0 0.0
    %595 = vmatmul.mubr.f32.gmra.mrb[0].mxu0 %v493
    %v596 = vpop.f32.mrb[0].mxu0
    %v597 = vadd.f32 %v477, %v596
    %v598 = vpop.f32.mrb[0].mxu0
    %599 = vdwg.mxu0
    %600 = vmatprep.subr.mxu0 0.0
    %601 = vmatpush1.msra.mxu0 %v435
    %602 = vmatprep.subr.mxu0 0.0
    %603 = vmatpush1.msra.mxu0 %v436
    %604 = vmatprep.subr.mxu0 0.0
    %605 = vmatpush1.msra.mxu0 %v437
    %606 = vmatprep.subr.mxu0 0.0
    %607 = vmatpush1.msra.mxu0 %v438
    %608 = vmatprep.subr.mxu0 0.0
    %609 = vmatpush1.msra.mxu0 0.0
    %610 = vmatprep.subr.mxu0 0.0
    %611 = vmatpush1.msra.mxu0 0.0
    %612 = vmatprep.subr.mxu0 0.0
    %613 = vmatpush1.msra.mxu0 0.0
    %614 = vmatprep.subr.mxu0 0.0
    %615 = vmatpush1.msra.mxu0 0.0
    %616 = vmatprep.subr.mxu0 0.0
    %617 = vmatpush1.msra.mxu0 0.0
    %618 = vmatprep.subr.mxu0 0.0
    %619 = vmatpush1.msra.mxu0 0.0
    %620 = vmatprep.subr.mxu0 0.0
    %621 = vmatpush1.msra.mxu0 0.0
    %622 = vmatprep.subr.mxu0 0.0
    %623 = vmatpush1.msra.mxu0 0.0
    %624 = vmatprep.subr.mxu0 0.0
    %625 = vmatpush1.msra.mxu0 0.0
    %626 = vmatprep.subr.mxu0 0.0
    %627 = vmatpush1.msra.mxu0 0.0
    %628 = vmatprep.subr.mxu0 0.0
    %629 = vmatpush1.msra.mxu0 0.0
    %630 = vmatprep.subr.mxu0 0.0
    %631 = vmatpush1.msra.mxu0 0.0
    %632 = vmatprep.subr.mxu0 0.0
    %633 = vmatpush1.msra.mxu0 0.0
    %634 = vmatprep.subr.mxu0 0.0
    %635 = vmatpush1.msra.mxu0 0.0
    %636 = vmatprep.subr.mxu0 0.0
    %637 = vmatpush1.msra.mxu0 0.0
    %638 = vmatprep.subr.mxu0 0.0
    %639 = vmatpush1.msra.mxu0 0.0
    %640 = vmatprep.subr.mxu0 0.0
    %641 = vmatpush1.msra.mxu0 0.0
    %642 = vmatprep.subr.mxu0 0.0
    %643 = vmatpush1.msra.mxu0 0.0
    %644 = vmatprep.subr.mxu0 0.0
    %645 = vmatpush1.msra.mxu0 0.0
    %646 = vmatprep.subr.mxu0 0.0
    %647 = vmatpush1.msra.mxu0 0.0
    %648 = vmatprep.subr.mxu0 0.0
    %649 = vmatpush1.msra.mxu0 0.0
    %650 = vmatprep.subr.mxu0 0.0
    %651 = vmatpush1.msra.mxu0 0.0
    %652 = vmatprep.subr.mxu0 0.0
    %653 = vmatpush1.msra.mxu0 0.0
    %654 = vmatprep.subr.mxu0 0.0
    %655 = vmatpush1.msra.mxu0 0.0
    %656 = vmatprep.subr.mxu0 0.0
    %657 = vmatpush1.msra.mxu0 0.0
    %658 = vmatprep.subr.mxu0 0.0
    %659 = vmatpush1.msra.mxu0 0.0
    %660 = vmatprep.subr.mxu0 0.0
    %661 = vmatpush1.msra.mxu0 0.0
    %662 = vmatprep.subr.mxu0 0.0
    %663 = vmatpush1.msra.mxu0 0.0
    %664 = vmatprep.mubr.f32.mxu0 0.0
    %665 = vmatmul.mubr.f32.gmra.mrb[0].mxu0 %v479
    %v666 = vpop.f32.mrb[0].mxu0
    %v667 = vadd.f32 %v442, %v666
    %v668 = vpop.f32.mrb[0].mxu0
    %669 = vmatprep.mubr.f32.mxu0 0.0
    %670 = vmatmul.mubr.f32.gmra.mrb[0].mxu0 %v481
    %v671 = vpop.f32.mrb[0].mxu0
    %v672 = vadd.f32 %v447, %v671
    %v673 = vpop.f32.mrb[0].mxu0
    %674 = vmatprep.mubr.f32.mxu0 0.0
    %675 = vmatmul.mubr.f32.gmra.mrb[0].mxu0 %v483
    %v676 = vpop.f32.mrb[0].mxu0
    %v677 = vadd.f32 %v452, %v676
    %v678 = vpop.f32.mrb[0].mxu0
    %679 = vmatprep.mubr.f32.mxu0 0.0
    %680 = vmatmul.mubr.f32.gmra.mrb[0].mxu0 %v485
    %v681 = vpop.f32.mrb[0].mxu0
    %v682 = vadd.f32 %v457, %v681
    %v683 = vpop.f32.mrb[0].mxu0
    %684 = vmatprep.mubr.f32.mxu0 0.0
    %685 = vmatmul.mubr.f32.gmra.mrb[0].mxu0 %v487
    %v686 = vpop.f32.mrb[0].mxu0
    %v687 = vadd.f32 %v462, %v686
    %v688 = vpop.f32.mrb[0].mxu0
    %689 = vmatprep.mubr.f32.mxu0 0.0
    %690 = vmatmul.mubr.f32.gmra.mrb[0].mxu0 %v489
    %v691 = vpop.f32.mrb[0].mxu0
    %v692 = vadd.f32 %v467, %v691
    %v693 = vpop.f32.mrb[0].mxu0
    %694 = vmatprep.mubr.f32.mxu0 0.0
    %695 = vmatmul.mubr.f32.gmra.mrb[0].mxu0 %v491
    %v696 = vpop.f32.mrb[0].mxu0
    %v697 = vadd.f32 %v472, %v696
    %v698 = vpop.f32.mrb[0].mxu0
    %699 = vmatprep.mubr.f32.mxu0 0.0
    %700 = vmatmul.mubr.f32.gmra.mrb[0].mxu0 %v493
    %v701 = vpop.f32.mrb[0].mxu0
    %v702 = vadd.f32 %v477, %v701
    %v703 = vpop.f32.mrb[0].mxu0
    %704 = vdwg.mxu0
    %v705 = vmul.f32 %v562, 0.5
    %v706 = vmul.f32 %v567, 0.5
    %v707 = vmul.f32 %v572, 0.5
    %v708 = vmul.f32 %v577, 0.5
    %v709 = vmul.f32 %v582, 0.5
    %v710 = vmul.f32 %v587, 0.5
    %v711 = vmul.f32 %v592, 0.5
    %v712 = vmul.f32 %v597, 0.5
    %v713 = vmul.f32 %v667, 0.5
    %v714 = vmul.f32 %v672, 0.5
    %v715 = vmul.f32 %v677, 0.5
    %v716 = vmul.f32 %v682, 0.5
    %v717 = vmul.f32 %v687, 0.5
    %v718 = vmul.f32 %v692, 0.5
    %v719 = vmul.f32 %v697, 0.5
    %v720 = vmul.f32 %v702, 0.5
    %v721 = vmul.f32 %v562, 0.70710677
    %v722 = vmul.f32 %v567, 0.70710677
    %v723 = vmul.f32 %v572, 0.70710677
    %v724 = vmul.f32 %v577, 0.70710677
    %v725 = vmul.f32 %v582, 0.70710677
    %v726 = vmul.f32 %v587, 0.70710677
    %v727 = vmul.f32 %v592, 0.70710677
    %v728 = vmul.f32 %v597, 0.70710677
    %v729 = vmul.f32 %v667, 0.70710677
    %v730 = vmul.f32 %v672, 0.70710677
    %v731 = vmul.f32 %v677, 0.70710677
    %v732 = vmul.f32 %v682, 0.70710677
    %v733 = vmul.f32 %v687, 0.70710677
    %v734 = vmul.f32 %v692, 0.70710677
    %v735 = vmul.f32 %v697, 0.70710677
    %v736 = vmul.f32 %v702, 0.70710677
    %v737 = verf.f32.pop %v721
    %v738 = verf.f32.pop %v722
    %v739 = verf.f32.pop %v723
    %v740 = verf.f32.pop %v724
    %v741 = verf.f32.pop %v725
    %v742 = verf.f32.pop %v726
    %v743 = verf.f32.pop %v727
    %v744 = verf.f32.pop %v728
    %v745 = verf.f32.pop %v729
    %v746 = verf.f32.pop %v730
    %v747 = verf.f32.pop %v731
    %v748 = verf.f32.pop %v732
    %v749 = verf.f32.pop %v733
    %v750 = verf.f32.pop %v734
    %v751 = verf.f32.pop %v735
    %v752 = verf.f32.pop %v736
    %v753 = vadd.f32 %v737, 1.0
    %v754 = vadd.f32 %v738, 1.0
    %v755 = vadd.f32 %v739, 1.0
    %v756 = vadd.f32 %v740, 1.0
    %v757 = vadd.f32 %v741, 1.0
    %v758 = vadd.f32 %v742, 1.0
    %v759 = vadd.f32 %v743, 1.0
    %v760 = vadd.f32 %v744, 1.0
    %v761 = vadd.f32 %v745, 1.0
    %v762 = vadd.f32 %v746, 1.0
    %v763 = vadd.f32 %v747, 1.0
    %v764 = vadd.f32 %v748, 1.0
    %v765 = vadd.f32 %v749, 1.0
    %v766 = vadd.f32 %v750, 1.0
    %v767 = vadd.f32 %v751, 1.0
    %v768 = vadd.f32 %v752, 1.0
    %v769 = vmul.f32 %v705, %v753
    %v770 = vmul.f32 %v706, %v754
    %v771 = vmul.f32 %v707, %v755
    %v772 = vmul.f32 %v708, %v756
    %v773 = vmul.f32 %v709, %v757
    %v774 = vmul.f32 %v710, %v758
    %v775 = vmul.f32 %v711, %v759
    %v776 = vmul.f32 %v712, %v760
    %v777 = vmul.f32 %v713, %v761
    %v778 = vmul.f32 %v714, %v762
    %v779 = vmul.f32 %v715, %v763
    %v780 = vmul.f32 %v716, %v764
    %v781 = vmul.f32 %v717, %v765
    %v782 = vmul.f32 %v718, %v766
    %v783 = vmul.f32 %v719, %v767
    %v784 = vmul.f32 %v720, %v768
    %786 = vset.pattern.permute.xlu0 64
    %787 = vperm.xlu0 %786, %v93
    %v788 = vpop.permute.xlu0 %787
    %791 = vset.pattern.permute.xlu0 64
    %792 = vperm.xlu0 %791, %v94
    %v793 = vpop.permute.xlu0 %792
    %796 = vset.pattern.permute.xlu0 64
    %797 = vperm.xlu0 %796, %v95
    %v798 = vpop.permute.xlu0 %797
    %801 = vset.pattern.permute.xlu0 64
    %802 = vperm.xlu0 %801, %v96
    %v803 = vpop.permute.xlu0 %802
    %vm805 = vcmask 523264
    %v806 = vsel %vm805, %v93, 0
    %v808 = vsel %vm805, %v94, 0
    %v810 = vsel %vm805, %v95, 0
    %v812 = vsel %vm805, %v96, 0
    %814 = vmatprep.subr.mxu0 0.0
    %815 = vmatpush1.msra.mxu0 %v769
    %816 = vmatprep.subr.mxu0 0.0
    %817 = vmatpush1.msra.mxu0 %v770
    %818 = vmatprep.subr.mxu0 0.0
    %819 = vmatpush1.msra.mxu0 %v771
    %820 = vmatprep.subr.mxu0 0.0
    %821 = vmatpush1.msra.mxu0 %v772
    %822 = vmatprep.subr.mxu0 0.0
    %823 = vmatpush1.msra.mxu0 %v773
    %824 = vmatprep.subr.mxu0 0.0
    %825 = vmatpush1.msra.mxu0 %v774
    %826 = vmatprep.subr.mxu0 0.0
    %827 = vmatpush1.msra.mxu0 %v775
    %828 = vmatprep.subr.mxu0 0.0
    %829 = vmatpush1.msra.mxu0 %v776
    %830 = vmatprep.subr.mxu0 0.0
    %831 = vmatpush1.msra.mxu0 0.0
    %832 = vmatprep.subr.mxu0 0.0
    %833 = vmatpush1.msra.mxu0 0.0
    %834 = vmatprep.subr.mxu0 0.0
    %835 = vmatpush1.msra.mxu0 0.0
    %836 = vmatprep.subr.mxu0 0.0
    %837 = vmatpush1.msra.mxu0 0.0
    %838 = vmatprep.subr.mxu0 0.0
    %839 = vmatpush1.msra.mxu0 0.0
    %840 = vmatprep.subr.mxu0 0.0
    %841 = vmatpush1.msra.mxu0 0.0
    %842 = vmatprep.subr.mxu0 0.0
    %843 = vmatpush1.msra.mxu0 0.0
    %844 = vmatprep.subr.mxu0 0.0
    %845 = vmatpush1.msra.mxu0 0.0
    %846 = vmatprep.subr.mxu0 0.0
    %847 = vmatpush1.msra.mxu0 0.0
    %848 = vmatprep.subr.mxu0 0.0
    %849 = vmatpush1.msra.mxu0 0.0
    %850 = vmatprep.subr.mxu0 0.0
    %851 = vmatpush1.msra.mxu0 0.0
    %852 = vmatprep.subr.mxu0 0.0
    %853 = vmatpush1.msra.mxu0 0.0
    %854 = vmatprep.subr.mxu0 0.0
    %855 = vmatpush1.msra.mxu0 0.0
    %856 = vmatprep.subr.mxu0 0.0
    %857 = vmatpush1.msra.mxu0 0.0
    %858 = vmatprep.subr.mxu0 0.0
    %859 = vmatpush1.msra.mxu0 0.0
    %860 = vmatprep.subr.mxu0 0.0
    %861 = vmatpush1.msra.mxu0 0.0
    %862 = vmatprep.subr.mxu0 0.0
    %863 = vmatpush1.msra.mxu0 0.0
    %864 = vmatprep.subr.mxu0 0.0
    %865 = vmatpush1.msra.mxu0 0.0
    %866 = vmatprep.subr.mxu0 0.0
    %867 = vmatpush1.msra.mxu0 0.0
    %868 = vmatprep.subr.mxu0 0.0
    %869 = vmatpush1.msra.mxu0 0.0
    %870 = vmatprep.subr.mxu0 0.0
    %871 = vmatpush1.msra.mxu0 0.0
    %872 = vmatprep.subr.mxu0 0.0
    %873 = vmatpush1.msra.mxu0 0.0
    %874 = vmatprep.subr.mxu0 0.0
    %875 = vmatpush1.msra.mxu0 0.0
    %876 = vmatprep.subr.mxu0 0.0
    %877 = vmatpush1.msra.mxu0 0.0
    %878 = vmatprep.mubr.f32.mxu0 0.0
    %879 = vmatmul.mubr.f32.gmra.mrb[0].mxu0 %v806
    %v880 = vpop.f32.mrb[0].mxu0
    %v881 = vadd.f32 %v788, %v880
    %v882 = vpop.f32.mrb[0].mxu0
    %883 = vmatprep.mubr.f32.mxu0 0.0
    %884 = vmatmul.mubr.f32.gmra.mrb[0].mxu0 %v808
    %v885 = vpop.f32.mrb[0].mxu0
    %v886 = vadd.f32 %v793, %v885
    %v887 = vpop.f32.mrb[0].mxu0
    %888 = vmatprep.mubr.f32.mxu0 0.0
    %889 = vmatmul.mubr.f32.gmra.mrb[0].mxu0 %v810
    %v890 = vpop.f32.mrb[0].mxu0
    %v891 = vadd.f32 %v798, %v890
    %v892 = vpop.f32.mrb[0].mxu0
    %893 = vmatprep.mubr.f32.mxu0 0.0
    %894 = vmatmul.mubr.f32.gmra.mrb[0].mxu0 %v812
    %v895 = vpop.f32.mrb[0].mxu0
    %v896 = vadd.f32 %v803, %v895
    %v897 = vpop.f32.mrb[0].mxu0
    %898 = vdwg.mxu0
    %899 = vmatprep.subr.mxu0 0.0
    %900 = vmatpush1.msra.mxu0 %v777
    %901 = vmatprep.subr.mxu0 0.0
    %902 = vmatpush1.msra.mxu0 %v778
    %903 = vmatprep.subr.mxu0 0.0
    %904 = vmatpush1.msra.mxu0 %v779
    %905 = vmatprep.subr.mxu0 0.0
    %906 = vmatpush1.msra.mxu0 %v780
    %907 = vmatprep.subr.mxu0 0.0
    %908 = vmatpush1.msra.mxu0 %v781
    %909 = vmatprep.subr.mxu0 0.0
    %910 = vmatpush1.msra.mxu0 %v782
    %911 = vmatprep.subr.mxu0 0.0
    %912 = vmatpush1.msra.mxu0 %v783
    %913 = vmatprep.subr.mxu0 0.0
    %914 = vmatpush1.msra.mxu0 %v784
    %915 = vmatprep.subr.mxu0 0.0
    %916 = vmatpush1.msra.mxu0 0.0
    %917 = vmatprep.subr.mxu0 0.0
    %918 = vmatpush1.msra.mxu0 0.0
    %919 = vmatprep.subr.mxu0 0.0
    %920 = vmatpush1.msra.mxu0 0.0
    %921 = vmatprep.subr.mxu0 0.0
    %922 = vmatpush1.msra.mxu0 0.0
    %923 = vmatprep.subr.mxu0 0.0
    %924 = vmatpush1.msra.mxu0 0.0
    %925 = vmatprep.subr.mxu0 0.0
    %926 = vmatpush1.msra.mxu0 0.0
    %927 = vmatprep.subr.mxu0 0.0
    %928 = vmatpush1.msra.mxu0 0.0
    %929 = vmatprep.subr.mxu0 0.0
    %930 = vmatpush1.msra.mxu0 0.0
    %931 = vmatprep.subr.mxu0 0.0
    %932 = vmatpush1.msra.mxu0 0.0
    %933 = vmatprep.subr.mxu0 0.0
    %934 = vmatpush1.msra.mxu0 0.0
    %935 = vmatprep.subr.mxu0 0.0
    %936 = vmatpush1.msra.mxu0 0.0
    %937 = vmatprep.subr.mxu0 0.0
    %938 = vmatpush1.msra.mxu0 0.0
    %939 = vmatprep.subr.mxu0 0.0
    %940 = vmatpush1.msra.mxu0 0.0
    %941 = vmatprep.subr.mxu0 0.0
    %942 = vmatpush1.msra.mxu0 0.0
    %943 = vmatprep.subr.mxu0 0.0
    %944 = vmatpush1.msra.mxu0 0.0
    %945 = vmatprep.subr.mxu0 0.0
    %946 = vmatpush1.msra.mxu0 0.0
    %947 = vmatprep.subr.mxu0 0.0
    %948 = vmatpush1.msra.mxu0 0.0
    %949 = vmatprep.subr.mxu0 0.0
    %950 = vmatpush1.msra.mxu0 0.0
    %951 = vmatprep.subr.mxu0 0.0
    %952 = vmatpush1.msra.mxu0 0.0
    %953 = vmatprep.subr.mxu0 0.0
    %954 = vmatpush1.msra.mxu0 0.0
    %955 = vmatprep.subr.mxu0 0.0
    %956 = vmatpush1.msra.mxu0 0.0
    %957 = vmatprep.subr.mxu0 0.0
    %958 = vmatpush1.msra.mxu0 0.0
    %959 = vmatprep.subr.mxu0 0.0
    %960 = vmatpush1.msra.mxu0 0.0
    %961 = vmatprep.subr.mxu0 0.0
    %962 = vmatpush1.msra.mxu0 0.0
    %963 = vmatprep.mubr.f32.mxu0 0.0
    %964 = vmatmul.mubr.f32.gmra.mrb[0].mxu0 %v806
    %v965 = vpop.f32.mrb[0].mxu0
    %v966 = vadd.f32 %v788, %v965
    %v967 = vpop.f32.mrb[0].mxu0
    %968 = vmatprep.mubr.f32.mxu0 0.0
    %969 = vmatmul.mubr.f32.gmra.mrb[0].mxu0 %v808
    %v970 = vpop.f32.mrb[0].mxu0
    %v971 = vadd.f32 %v793, %v970
    %v972 = vpop.f32.mrb[0].mxu0
    %973 = vmatprep.mubr.f32.mxu0 0.0
    %974 = vmatmul.mubr.f32.gmra.mrb[0].mxu0 %v810
    %v975 = vpop.f32.mrb[0].mxu0
    %v976 = vadd.f32 %v798, %v975
    %v977 = vpop.f32.mrb[0].mxu0
    %978 = vmatprep.mubr.f32.mxu0 0.0
    %979 = vmatmul.mubr.f32.gmra.mrb[0].mxu0 %v812
    %v980 = vpop.f32.mrb[0].mxu0
    %v981 = vadd.f32 %v803, %v980
    %v982 = vpop.f32.mrb[0].mxu0
    %983 = vdwg.mxu0
    %v984 = vadd.f32 %v68, %v881
    %v985 = vadd.f32 %v69, %v886
    %v986 = vadd.f32 %v70, %v891
    %v987 = vadd.f32 %v71, %v896
    %v988 = vadd.f32 %v72, %v966
    %v989 = vadd.f32 %v73, %v971
    %v990 = vadd.f32 %v74, %v976
    %v991 = vadd.f32 %v75, %v981
    %992 = vadd.xlane.f32.xlu0 %v984
    %v993 = vpop.xlane.xlu0 %992
    %994 = vadd.xlane.f32.xlu0 %v985
    %v995 = vpop.xlane.xlu0 %994
    %996 = vadd.xlane.f32.xlu0 %v986
    %v997 = vpop.xlane.xlu0 %996
    %998 = vadd.xlane.f32.xlu0 %v987
    %v999 = vpop.xlane.xlu0 %998
    %1000 = vadd.xlane.f32.xlu0 %v988
    %v1001 = vpop.xlane.xlu0 %1000
    %1002 = vadd.xlane.f32.xlu0 %v989
    %v1003 = vpop.xlane.xlu0 %1002
    %1004 = vadd.xlane.f32.xlu0 %v990
    %v1005 = vpop.xlane.xlu0 %1004
    %1006 = vadd.xlane.f32.xlu0 %v991
    %v1007 = vpop.xlane.xlu0 %1006
    %v1008 = vmul.f32 %v993, %v342
    %v1009 = vmul.f32 %v995, %v342
    %v1010 = vmul.f32 %v997, %v342
    %v1011 = vmul.f32 %v999, %v342
    %v1012 = vmul.f32 %v1001, %v342
    %v1013 = vmul.f32 %v1003, %v342
    %v1014 = vmul.f32 %v1005, %v342
    %v1015 = vmul.f32 %v1007, %v342
    %v1016 = vsub.f32 %v984, %v1008
    %v1017 = vsub.f32 %v985, %v1009
    %v1018 = vsub.f32 %v986, %v1010
    %v1019 = vsub.f32 %v987, %v1011
    %v1020 = vsub.f32 %v988, %v1012
    %v1021 = vsub.f32 %v989, %v1013
    %v1022 = vsub.f32 %v990, %v1014
    %v1023 = vsub.f32 %v991, %v1015
    %v1024 = vmul.f32 %v1016, %v1016
    %v1025 = vmul.f32 %v1017, %v1017
    %v1026 = vmul.f32 %v1018, %v1018
    %v1027 = vmul.f32 %v1019, %v1019
    %v1028 = vmul.f32 %v1020, %v1020
    %v1029 = vmul.f32 %v1021, %v1021
    %v1030 = vmul.f32 %v1022, %v1022
    %v1031 = vmul.f32 %v1023, %v1023
    %1032 = vadd.xlane.f32.xlu0 %v1024
    %v1033 = vpop.xlane.xlu0 %1032
    %1034 = vadd.xlane.f32.xlu0 %v1025
    %v1035 = vpop.xlane.xlu0 %1034
    %1036 = vadd.xlane.f32.xlu0 %v1026
    %v1037 = vpop.xlane.xlu0 %1036
    %1038 = vadd.xlane.f32.xlu0 %v1027
    %v1039 = vpop.xlane.xlu0 %1038
    %1040 = vadd.xlane.f32.xlu0 %v1028
    %v1041 = vpop.xlane.xlu0 %1040
    %1042 = vadd.xlane.f32.xlu0 %v1029
    %v1043 = vpop.xlane.xlu0 %1042
    %1044 = vadd.xlane.f32.xlu0 %v1030
    %v1045 = vpop.xlane.xlu0 %1044
    %1046 = vadd.xlane.f32.xlu0 %v1031
    %v1047 = vpop.xlane.xlu0 %1046
    %v1048 = vmul.f32 %v1033, %v342
    %v1049 = vmul.f32 %v1035, %v342
    %v1050 = vmul.f32 %v1037, %v342
    %v1051 = vmul.f32 %v1039, %v342
    %v1052 = vmul.f32 %v1041, %v342
    %v1053 = vmul.f32 %v1043, %v342
    %v1054 = vmul.f32 %v1045, %v342
    %v1055 = vmul.f32 %v1047, %v342
    %v1056 = vadd.f32 %v1048, 1e-05
    %v1057 = vadd.f32 %v1049, 1e-05
    %v1058 = vadd.f32 %v1050, 1e-05
    %v1059 = vadd.f32 %v1051, 1e-05
    %v1060 = vadd.f32 %v1052, 1e-05
    %v1061 = vadd.f32 %v1053, 1e-05
    %v1062 = vadd.f32 %v1054, 1e-05
    %v1063 = vadd.f32 %v1055, 1e-05
    %v1064 = vrsqrt.pop %v1056
    %v1065 = vrsqrt.pop %v1057
    %v1066 = vrsqrt.pop %v1058
    %v1067 = vrsqrt.pop %v1059
    %v1068 = vrsqrt.pop %v1060
    %v1069 = vrsqrt.pop %v1061
    %v1070 = vrsqrt.pop %v1062
    %v1071 = vrsqrt.pop %v1063
    %v1072 = vmul.f32 %v1016, %v1064
    %v1073 = vmul.f32 %v1017, %v1065
    %v1074 = vmul.f32 %v1018, %v1066
    %v1075 = vmul.f32 %v1019, %v1067
    %v1076 = vmul.f32 %v1020, %v1068
    %v1077 = vmul.f32 %v1021, %v1069
    %v1078 = vmul.f32 %v1022, %v1070
    %v1079 = vmul.f32 %v1023, %v1071
    %v1080 = vlaneseq
    %v1081 = vshrl.u32 %v1080, 7
    %v1082 = vsub.s32 2, %v1081
    %v1083 = vrot.slane %v84, %v1082
    %v1084 = vmul.f32 %v1072, %v1083
    %v1085 = vmul.f32 %v1073, %v1083
    %v1086 = vmul.f32 %v1074, %v1083
    %v1087 = vmul.f32 %v1075, %v1083
    %v1088 = vmul.f32 %v1076, %v1083
    %v1089 = vmul.f32 %v1077, %v1083
    %v1090 = vmul.f32 %v1078, %v1083
    %v1091 = vmul.f32 %v1079, %v1083
    %v1092 = vlaneseq
    %v1093 = vshrl.u32 %v1092, 7
    %v1094 = vsub.s32 3, %v1093
    %v1095 = vrot.slane %v84, %v1094
    %v1096 = vadd.f32 %v1084, %v1095
    %v1097 = vadd.f32 %v1085, %v1095
    %v1098 = vadd.f32 %v1086, %v1095
    %v1099 = vadd.f32 %v1087, %v1095
    %v1100 = vadd.f32 %v1088, %v1095
    %v1101 = vadd.f32 %v1089, %v1095
    %v1102 = vadd.f32 %v1090, %v1095
    %v1103 = vadd.f32 %v1091, %v1095
    %v1104 = vlaneseq
    %v1105 = vshrl.u32 %v1104, 7
    %v1106 = vsub.s32 0, %v1105
    %v1107 = vrot.slane %v113, %v1106
    %1108 = vmatprep.subr.mxu0 0.0
    %1109 = vmatpush1.msra.mxu0 %v97
    %1110 = vmatprep.subr.mxu0 0.0
    %1111 = vmatpush1.msra.mxu0 %v98
    %1112 = vmatprep.subr.mxu0 0.0
    %1113 = vmatpush1.msra.mxu0 %v99
    %1114 = vmatprep.subr.mxu0 0.0
    %1115 = vmatpush1.msra.mxu0 %v100
    %1116 = vmatprep.subr.mxu0 0.0
    %1117 = vmatpush1.msra.mxu0 %v101
    %1118 = vmatprep.subr.mxu0 0.0
    %1119 = vmatpush1.msra.mxu0 %v102
    %1120 = vmatprep.subr.mxu0 0.0
    %1121 = vmatpush1.msra.mxu0 %v103
    %1122 = vmatprep.subr.mxu0 0.0
    %1123 = vmatpush1.msra.mxu0 %v104
    %1124 = vmatprep.subr.mxu0 0.0
    %1125 = vmatpush1.msra.mxu0 %v105
    %1126 = vmatprep.subr.mxu0 0.0
    %1127 = vmatpush1.msra.mxu0 %v106
    %1128 = vmatprep.subr.mxu0 0.0
    %1129 = vmatpush1.msra.mxu0 %v107
    %1130 = vmatprep.subr.mxu0 0.0
    %1131 = vmatpush1.msra.mxu0 %v108
    %1132 = vmatprep.subr.mxu0 0.0
    %1133 = vmatpush1.msra.mxu0 %v109
    %1134 = vmatprep.subr.mxu0 0.0
    %1135 = vmatpush1.msra.mxu0 %v110
    %1136 = vmatprep.subr.mxu0 0.0
    %1137 = vmatpush1.msra.mxu0 %v111
    %1138 = vmatprep.subr.mxu0 0.0
    %1139 = vmatpush1.msra.mxu0 %v112
    %1140 = vmatprep.subr.mxu0 0.0
    %1141 = vmatpush1.msra.mxu0 0.0
    %1142 = vmatprep.subr.mxu0 0.0
    %1143 = vmatpush1.msra.mxu0 0.0
    %1144 = vmatprep.subr.mxu0 0.0
    %1145 = vmatpush1.msra.mxu0 0.0
    %1146 = vmatprep.subr.mxu0 0.0
    %1147 = vmatpush1.msra.mxu0 0.0
    %1148 = vmatprep.subr.mxu0 0.0
    %1149 = vmatpush1.msra.mxu0 0.0
    %1150 = vmatprep.subr.mxu0 0.0
    %1151 = vmatpush1.msra.mxu0 0.0
    %1152 = vmatprep.subr.mxu0 0.0
    %1153 = vmatpush1.msra.mxu0 0.0
    %1154 = vmatprep.subr.mxu0 0.0
    %1155 = vmatpush1.msra.mxu0 0.0
    %1156 = vmatprep.subr.mxu0 0.0
    %1157 = vmatpush1.msra.mxu0 0.0
    %1158 = vmatprep.subr.mxu0 0.0
    %1159 = vmatpush1.msra.mxu0 0.0
    %1160 = vmatprep.subr.mxu0 0.0
    %1161 = vmatpush1.msra.mxu0 0.0
    %1162 = vmatprep.subr.mxu0 0.0
    %1163 = vmatpush1.msra.mxu0 0.0
    %1164 = vmatprep.subr.mxu0 0.0
    %1165 = vmatpush1.msra.mxu0 0.0
    %1166 = vmatprep.subr.mxu0 0.0
    %1167 = vmatpush1.msra.mxu0 0.0
    %1168 = vmatprep.subr.mxu0 0.0
    %1169 = vmatpush1.msra.mxu0 0.0
    %1170 = vmatprep.subr.mxu0 0.0
    %1171 = vmatpush1.msra.mxu0 0.0
    %1172 = vmatprep.mubr.f32.mxu0 0.0
    %1173 = vmatmul.mubr.f32.gmra.mrb[0].mxu0 %v1096
    %v1174 = vpop.f32.mrb[0].mxu0
    %v1175 = vadd.f32 %v1107, %v1174
    %v1176 = vpop.f32.mrb[0].mxu0
    %1177 = vmatprep.mubr.f32.mxu0 0.0
    %1178 = vmatmul.mubr.f32.gmra.mrb[0].mxu0 %v1097
    %v1179 = vpop.f32.mrb[0].mxu0
    %v1180 = vadd.f32 %v1107, %v1179
    %v1181 = vpop.f32.mrb[0].mxu0
    %1182 = vmatprep.mubr.f32.mxu0 0.0
    %1183 = vmatmul.mubr.f32.gmra.mrb[0].mxu0 %v1098
    %v1184 = vpop.f32.mrb[0].mxu0
    %v1185 = vadd.f32 %v1107, %v1184
    %v1186 = vpop.f32.mrb[0].mxu0
    %1187 = vmatprep.mubr.f32.mxu0 0.0
    %1188 = vmatmul.mubr.f32.gmra.mrb[0].mxu0 %v1099
    %v1189 = vpop.f32.mrb[0].mxu0
    %v1190 = vadd.f32 %v1107, %v1189
    %v1191 = vpop.f32.mrb[0].mxu0
    %1192 = vmatprep.mubr.f32.mxu0 0.0
    %1193 = vmatmul.mubr.f32.gmra.mrb[0].mxu0 %v1100
    %v1194 = vpop.f32.mrb[0].mxu0
    %v1195 = vadd.f32 %v1107, %v1194
    %v1196 = vpop.f32.mrb[0].mxu0
    %1197 = vmatprep.mubr.f32.mxu0 0.0
    %1198 = vmatmul.mubr.f32.gmra.mrb[0].mxu0 %v1101
    %v1199 = vpop.f32.mrb[0].mxu0
    %v1200 = vadd.f32 %v1107, %v1199
    %v1201 = vpop.f32.mrb[0].mxu0
    %1202 = vmatprep.mubr.f32.mxu0 0.0
    %1203 = vmatmul.mubr.f32.gmra.mrb[0].mxu0 %v1102
    %v1204 = vpop.f32.mrb[0].mxu0
    %v1205 = vadd.f32 %v1107, %v1204
    %v1206 = vpop.f32.mrb[0].mxu0
    %1207 = vmatprep.mubr.f32.mxu0 0.0
    %1208 = vmatmul.mubr.f32.gmra.mrb[0].mxu0 %v1103
    %v1209 = vpop.f32.mrb[0].mxu0
    %v1210 = vadd.f32 %v1107, %v1209
    %v1211 = vpop.f32.mrb[0].mxu0
    %1212 = vdwg.mxu0
    %v1213 = vmul.f32 %v1175, 0.5
    %v1214 = vmul.f32 %v1180, 0.5
    %v1215 = vmul.f32 %v1185, 0.5
    %v1216 = vmul.f32 %v1190, 0.5
    %v1217 = vmul.f32 %v1195, 0.5
    %v1218 = vmul.f32 %v1200, 0.5
    %v1219 = vmul.f32 %v1205, 0.5
    %v1220 = vmul.f32 %v1210, 0.5
    %v1221 = vmul.f32 %v1175, 0.70710677
    %v1222 = vmul.f32 %v1180, 0.70710677
    %v1223 = vmul.f32 %v1185, 0.70710677
    %v1224 = vmul.f32 %v1190, 0.70710677
    %v1225 = vmul.f32 %v1195, 0.70710677
    %v1226 = vmul.f32 %v1200, 0.70710677
    %v1227 = vmul.f32 %v1205, 0.70710677
    %v1228 = vmul.f32 %v1210, 0.70710677
    %v1229 = verf.f32.pop %v1221
    %v1230 = verf.f32.pop %v1222
    %v1231 = verf.f32.pop %v1223
    %v1232 = verf.f32.pop %v1224
    %v1233 = verf.f32.pop %v1225
    %v1234 = verf.f32.pop %v1226
    %v1235 = verf.f32.pop %v1227
    %v1236 = verf.f32.pop %v1228
    %v1237 = vadd.f32 %v1229, 1.0
    %v1238 = vadd.f32 %v1230, 1.0
    %v1239 = vadd.f32 %v1231, 1.0
    %v1240 = vadd.f32 %v1232, 1.0
    %v1241 = vadd.f32 %v1233, 1.0
    %v1242 = vadd.f32 %v1234, 1.0
    %v1243 = vadd.f32 %v1235, 1.0
    %v1244 = vadd.f32 %v1236, 1.0
    %v1245 = vmul.f32 %v1213, %v1237
    %v1246 = vmul.f32 %v1214, %v1238
    %v1247 = vmul.f32 %v1215, %v1239
    %v1248 = vmul.f32 %v1216, %v1240
    %v1249 = vmul.f32 %v1217, %v1241
    %v1250 = vmul.f32 %v1218, %v1242
    %v1251 = vmul.f32 %v1219, %v1243
    %v1252 = vmul.f32 %v1220, %v1244
    %v1253 = vlaneseq
    %v1254 = vshrl.u32 %v1253, 7
    %v1255 = vsub.s32 0, %v1254
    %v1256 = vrot.slane %v130, %v1255
    %1257 = vmatprep.subr.mxu0 0.0
    %1258 = vmatpush1.msra.mxu0 %v114
    %1259 = vmatprep.subr.mxu0 0.0
    %1260 = vmatpush1.msra.mxu0 %v115
    %1261 = vmatprep.subr.mxu0 0.0
    %1262 = vmatpush1.msra.mxu0 %v116
    %1263 = vmatprep.subr.mxu0 0.0
    %1264 = vmatpush1.msra.mxu0 %v117
    %1265 = vmatprep.subr.mxu0 0.0
    %1266 = vmatpush1.msra.mxu0 %v118
    %1267 = vmatprep.subr.mxu0 0.0
    %1268 = vmatpush1.msra.mxu0 %v119
    %1269 = vmatprep.subr.mxu0 0.0
    %1270 = vmatpush1.msra.mxu0 %v120
    %1271 = vmatprep.subr.mxu0 0.0
    %1272 = vmatpush1.msra.mxu0 %v121
    %1273 = vmatprep.subr.mxu0 0.0
    %1274 = vmatpush1.msra.mxu0 %v122
    %1275 = vmatprep.subr.mxu0 0.0
    %1276 = vmatpush1.msra.mxu0 %v123
    %1277 = vmatprep.subr.mxu0 0.0
    %1278 = vmatpush1.msra.mxu0 %v124
    %1279 = vmatprep.subr.mxu0 0.0
    %1280 = vmatpush1.msra.mxu0 %v125
    %1281 = vmatprep.subr.mxu0 0.0
    %1282 = vmatpush1.msra.mxu0 %v126
    %1283 = vmatprep.subr.mxu0 0.0
    %1284 = vmatpush1.msra.mxu0 %v127
    %1285 = vmatprep.subr.mxu0 0.0
    %1286 = vmatpush1.msra.mxu0 %v128
    %1287 = vmatprep.subr.mxu0 0.0
    %1288 = vmatpush1.msra.mxu0 %v129
    %1289 = vmatprep.subr.mxu0 0.0
    %1290 = vmatpush1.msra.mxu0 0.0
    %1291 = vmatprep.subr.mxu0 0.0
    %1292 = vmatpush1.msra.mxu0 0.0
    %1293 = vmatprep.subr.mxu0 0.0
    %1294 = vmatpush1.msra.mxu0 0.0
    %1295 = vmatprep.subr.mxu0 0.0
    %1296 = vmatpush1.msra.mxu0 0.0
    %1297 = vmatprep.subr.mxu0 0.0
    %1298 = vmatpush1.msra.mxu0 0.0
    %1299 = vmatprep.subr.mxu0 0.0
    %1300 = vmatpush1.msra.mxu0 0.0
    %1301 = vmatprep.subr.mxu0 0.0
    %1302 = vmatpush1.msra.mxu0 0.0
    %1303 = vmatprep.subr.mxu0 0.0
    %1304 = vmatpush1.msra.mxu0 0.0
    %1305 = vmatprep.subr.mxu0 0.0
    %1306 = vmatpush1.msra.mxu0 0.0
    %1307 = vmatprep.subr.mxu0 0.0
    %1308 = vmatpush1.msra.mxu0 0.0
    %1309 = vmatprep.subr.mxu0 0.0
    %1310 = vmatpush1.msra.mxu0 0.0
    %1311 = vmatprep.subr.mxu0 0.0
    %1312 = vmatpush1.msra.mxu0 0.0
    %1313 = vmatprep.subr.mxu0 0.0
    %1314 = vmatpush1.msra.mxu0 0.0
    %1315 = vmatprep.subr.mxu0 0.0
    %1316 = vmatpush1.msra.mxu0 0.0
    %1317 = vmatprep.subr.mxu0 0.0
    %1318 = vmatpush1.msra.mxu0 0.0
    %1319 = vmatprep.subr.mxu0 0.0
    %1320 = vmatpush1.msra.mxu0 0.0
    %1321 = vmatprep.mubr.f32.mxu0 0.0
    %1322 = vmatmul.mubr.f32.gmra.mrb[0].mxu0 %v1245
    %v1323 = vpop.f32.mrb[0].mxu0
    %v1324 = vadd.f32 %v1256, %v1323
    %v1325 = vpop.f32.mrb[0].mxu0
    %1326 = vmatprep.mubr.f32.mxu0 0.0
    %1327 = vmatmul.mubr.f32.gmra.mrb[0].mxu0 %v1246
    %v1328 = vpop.f32.mrb[0].mxu0
    %v1329 = vadd.f32 %v1256, %v1328
    %v1330 = vpop.f32.mrb[0].mxu0
    %1331 = vmatprep.mubr.f32.mxu0 0.0
    %1332 = vmatmul.mubr.f32.gmra.mrb[0].mxu0 %v1247
    %v1333 = vpop.f32.mrb[0].mxu0
    %v1334 = vadd.f32 %v1256, %v1333
    %v1335 = vpop.f32.mrb[0].mxu0
    %1336 = vmatprep.mubr.f32.mxu0 0.0
    %1337 = vmatmul.mubr.f32.gmra.mrb[0].mxu0 %v1248
    %v1338 = vpop.f32.mrb[0].mxu0
    %v1339 = vadd.f32 %v1256, %v1338
    %v1340 = vpop.f32.mrb[0].mxu0
    %1341 = vmatprep.mubr.f32.mxu0 0.0
    %1342 = vmatmul.mubr.f32.gmra.mrb[0].mxu0 %v1249
    %v1343 = vpop.f32.mrb[0].mxu0
    %v1344 = vadd.f32 %v1256, %v1343
    %v1345 = vpop.f32.mrb[0].mxu0
    %1346 = vmatprep.mubr.f32.mxu0 0.0
    %1347 = vmatmul.mubr.f32.gmra.mrb[0].mxu0 %v1250
    %v1348 = vpop.f32.mrb[0].mxu0
    %v1349 = vadd.f32 %v1256, %v1348
    %v1350 = vpop.f32.mrb[0].mxu0
    %1351 = vmatprep.mubr.f32.mxu0 0.0
    %1352 = vmatmul.mubr.f32.gmra.mrb[0].mxu0 %v1251
    %v1353 = vpop.f32.mrb[0].mxu0
    %v1354 = vadd.f32 %v1256, %v1353
    %v1355 = vpop.f32.mrb[0].mxu0
    %1356 = vmatprep.mubr.f32.mxu0 0.0
    %1357 = vmatmul.mubr.f32.gmra.mrb[0].mxu0 %v1252
    %v1358 = vpop.f32.mrb[0].mxu0
    %v1359 = vadd.f32 %v1256, %v1358
    %v1360 = vpop.f32.mrb[0].mxu0
    %1361 = vdwg.mxu0
    %v1362 = vadd.f32 %v984, %v1324
    %v1363 = vadd.f32 %v985, %v1329
    %v1364 = vadd.f32 %v986, %v1334
    %v1365 = vadd.f32 %v987, %v1339
    %v1366 = vadd.f32 %v988, %v1344
    %v1367 = vadd.f32 %v989, %v1349
    %v1368 = vadd.f32 %v990, %v1354
    %v1369 = vadd.f32 %v991, %v1359
    %1370 = vst [vmem:[#allocation8] sm:$0xff] %v1362
    %1371 = vst [vmem:[#allocation8 + $0x8] sm:$0xff] %v1363
    %1372 = vst [vmem:[#allocation8 + $0x10] sm:$0xff] %v1364
    %1373 = vst [vmem:[#allocation8 + $0x18] sm:$0xff] %v1365
    %1374 = vst [vmem:[#allocation8 + $0x20] sm:$0xff] %v1366
    %1375 = vst [vmem:[#allocation8 + $0x28] sm:$0xff] %v1367
    %1376 = vst [vmem:[#allocation8 + $0x30] sm:$0xff] %v1368
    %1377 = vst [vmem:[#allocation8 + $0x38] sm:$0xff] %v1369
    // Predicated region
    $region42: #{tpu_custom_call.1} parent=1 // pred_check
      _
    $region43: #{tpu_custom_call.1} parent=1 // pred_check_branch
      %1379 = sbr.rel (0) target = $region45
    $region44: #{tpu_custom_call.1} parent=1 // pred_region
      %s1381 = ssub.s32 1024, 1024
      %1382 = vsyncadd [#allocation4], %s1381
      %s1383 = sshll.u32 [#allocation8], 4
      %s1384 = int_to_ptr.vmem [resolvable:$true] %s1383
      %1389 = dma.vmem_to_hbm [thread:$0]  %s1384, 1024, %s7, [#allocation4], 128, 128, 8
    $region45: #{tpu_custom_call.1} parent=1 // pred_fallthru
      _
    // Predicated region
    $region46: #{tpu_custom_call.1} parent=1 // pred_check
      _
    $region47: #{tpu_custom_call.1} parent=1 // pred_check_branch
      %1391 = sbr.rel (0) target = $region49
    $region48: #{tpu_custom_call.1} parent=1 // pred_region
      %1392 = dma.done [#allocation4], 1024
    $region49: #{tpu_custom_call.1} parent=1 // pred_fallthru
      _
    %1393 = vsyncpa [#allocation3], 1
    %1394 = vsyncpa [#allocation6], 1
    %1395 = vsyncpa [#allocation4], 1

</llo_original>
